<compile_context>
chip_gen: v7x
topology: tpu7x:2x2x1
jax: 0.10.0
libtpu: 0.0.40
codegen_flags: <defaults>
</compile_context>

<pallas_src>
import functools

import jax
import jax.numpy as jnp
from jax.experimental import pallas as pl
from jax.experimental.pallas import tpu as pltpu


def _residual_block_kernel(x_ref, wband_ref, w2blk_ref, o_ref, xpad_ref, acc_ref,
                           *, D, H, W, Cin, Cout):
    # x_ref    : (1, D, H, W*Cin)        f32   activation block (lane axis = W*Cin)
    # wband_ref: (3, 3, W*Cin, W*Cout)   bf16  conv1 weights, kw taps + W-halo folded in
    # w2blk_ref: (W*Cout, W*Cin)         bf16  conv2 (1x1x1) weights, block-diag over W
    # o_ref    : (1, D*H, W*Cin)         f32
    # xpad_ref : (D+2, H+2, W*Cin)       f32   VMEM scratch: zero-padded ReLU(x)
    # acc_ref  : (D*H, W*Cout)           f32   VMEM accumulator for conv1
    wc_in = W * Cin

    x = x_ref[0]                                          # (D, H, W*Cin) f32

    # In-kernel zero padding (D/H halo only; the W halo lives inside the weight band).
    xpad_ref[...] = jnp.zeros_like(xpad_ref)
    xpad_ref[1:D + 1, 1:H + 1, :] = jnp.maximum(x, 0.0)   # first ReLU

    # 3x3x3 conv: 9 (kd, kh) slab matmuls, each (D*H, W*Cin) x (W*Cin, W*Cout),
    # bf16 MXU operands, f32 accumulation in VMEM scratch.
    acc_ref[...] = jnp.zeros_like(acc_ref)
    for kd in range(3):
        for kh in range(3):
            slab = xpad_ref[kd:kd + D, kh:kh + H, :]       # (D, H, W*Cin)
            flat = slab.reshape(D * H, wc_in).astype(jnp.bfloat16)
            acc_ref[...] += jnp.dot(flat, wband_ref[kd, kh],
                                    preferred_element_type=jnp.float32)

    h = jnp.maximum(acc_ref[...], 0.0)                     # second ReLU (f32)
    y = jnp.dot(h.astype(jnp.bfloat16), w2blk_ref[...],    # 1x1x1 conv
                preferred_element_type=jnp.float32)        # (D*H, W*Cin) f32

    o_ref[0] = x.reshape(D * H, wc_in) + y                 # residual add (f32)


def _prepare_weights(w1_torch, w2_torch, W):
    """Fold the 3x3x3 conv's kw taps (and W-direction zero padding) into banded
    (W*Cin, W*Cout) weights per (kd, kh), and expand the 1x1x1 conv to a
    block-diagonal (W*Cout, W*Cin) matrix.  Pure-JAX, one-time weight prep."""
    Cout, Cin = w1_torch.shape[0], w1_torch.shape[1]
    # torch (Cout, Cin, kd, kh, kw) -> (kd, kh, kw, Cin, Cout)
    w1_t = jnp.transpose(w1_torch, (2, 3, 4, 1, 0))

    # wband[kd, kh, j*Cin + c, w*Cout + o] = w1_t[kd, kh, j - w + 1, c, o]
    #   if 0 <= j - w + 1 <= 2 else 0          (j = unpadded input W position)
    j = jnp.arange(W)[:, None]
    w = jnp.arange(W)[None, :]
    kw = j - w + 1                                              # (W, W)
    valid = (kw >= 0) & (kw <= 2)
    band = w1_t[:, :, jnp.clip(kw, 0, 2)]                       # (3,3,W,W,Cin,Cout)
    band = jnp.where(valid[None, None, :, :, None, None], band, 0.0)
    band = jnp.transpose(band, (0, 1, 2, 4, 3, 5))              # (3,3,W,Cin,W,Cout)
    wband = band.reshape(3, 3, W * Cin, W * Cout).astype(jnp.bfloat16)

    # 1x1x1 conv (Cout -> Cin) as a block-diagonal matrix over W.
    w2_m = jnp.transpose(w2_torch[:, :, 0, 0, 0], (1, 0))       # (Cout, Cin)
    w2blk = jnp.kron(jnp.eye(W, dtype=w2_m.dtype), w2_m).astype(jnp.bfloat16)
    return wband, w2blk


def residual_block(x, w1_torch, w2_torch):
    """x: (N, D, H, W, Cin) f32.  w1_torch: (Cout, Cin, 3,3,3).  w2_torch: (Cin, Cout, 1,1,1)."""
    N, D, H, W, Cin = x.shape
    Cout = w1_torch.shape[0]

    wband, w2blk = _prepare_weights(w1_torch, w2_torch, W)
    x_flat = x.reshape(N, D, H, W * Cin)        # free metadata reshape: lanes = W*Cin

    kernel = functools.partial(_residual_block_kernel, D=D, H=H, W=W, Cin=Cin, Cout=Cout)

    out = pl.pallas_call(
        kernel,
        out_shape=jax.ShapeDtypeStruct((N, D * H, W * Cin), x.dtype),
        grid_spec=pltpu.PrefetchScalarGridSpec(
            num_scalar_prefetch=0,
            grid=(N,),
            in_specs=[
                pl.BlockSpec((1, D, H, W * Cin), lambda n: (n, 0, 0, 0)),
                pl.BlockSpec((3, 3, W * Cin, W * Cout), lambda n: (0, 0, 0, 0)),
                pl.BlockSpec((W * Cout, W * Cin), lambda n: (0, 0)),
            ],
            out_specs=pl.BlockSpec((1, D * H, W * Cin), lambda n: (n, 0, 0)),
            scratch_shapes=[
                pltpu.VMEM((D + 2, H + 2, W * Cin), jnp.float32),   # padded ReLU(x)
                pltpu.VMEM((D * H, W * Cout), jnp.float32),          # conv1 accumulator
            ],
        ),
        compiler_params=pltpu.CompilerParams(
            dimension_semantics=("parallel",),
            vmem_limit_bytes=32 * 1024 * 1024,
        ),
        # TODO(synk): for production-sized volumes (e.g. 32^3 x 128ch) add a spatial
        # grid axis over D with a 1-slice halo (manual DMA double-buffer) so blocks
        # fit v7x's 64 MiB VMEM and both TensorCores get work even when N == 1.
    )(x_flat, wband, w2blk)

    return out.reshape(N, D, H, W, Cin)


def residual_block_ref(x, w1_torch, w2_torch):
    """Pure-JAX f32 reference (NDHWC) for correctness checking."""
    w1 = jnp.transpose(w1_torch, (2, 3, 4, 1, 0))   # DHWIO
    w2 = jnp.transpose(w2_torch, (2, 3, 4, 1, 0))   # DHWIO
    h = jax.nn.relu(x)
    h = jax.lax.conv_general_dilated(
        h, w1, window_strides=(1, 1, 1), padding="SAME",
        dimension_numbers=("NDHWC", "DHWIO", "NDHWC"))
    h = jax.nn.relu(h)
    h = jax.lax.conv_general_dilated(
        h, w2, window_strides=(1, 1, 1), padding="VALID",
        dimension_numbers=("NDHWC", "DHWIO", "NDHWC"))
    return x + h


if __name__ == "__main__":
    N, Cin, Cout = 2, 4, 8
    D = H = W = 8

    key = jax.random.PRNGKey(0)
    kx, kw1, kw2 = jax.random.split(key, 3)

    # Input built directly in NDHWC layout (equivalent to transposing a NCDHW tensor).
    x = jax.random.normal(kx, (N, D, H, W, Cin), dtype=jnp.float32)
    # Deterministic synthetic weights in PyTorch layouts.
    w1_torch = 0.1 * jax.random.normal(kw1, (Cout, Cin, 3, 3, 3), dtype=jnp.float32)
    w2_torch = 0.1 * jax.random.normal(kw2, (Cin, Cout, 1, 1, 1), dtype=jnp.float32)

    out = residual_block(x, w1_torch, w2_torch)
    out = jax.block_until_ready(out)

    ref = residual_block_ref(x, w1_torch, w2_torch)
    # bf16 MXU operands with f32 accumulation -> looser tolerance than pure-f32.
    assert jnp.allclose(out, ref, atol=2e-2, rtol=2e-2), "mismatch vs JAX reference"

    print("KERNEL_OK")
</pallas_src>

<mosaic_0001>
module attributes {stable_mosaic.version = 11 : i64} {
  func.func @_residual_block_kernel(%arg0: i32, %arg1: memref<1x8x8x32xf32, #tpu.memory_space<vmem>>, %arg2: memref<3x3x32x64xbf16, #tpu.memory_space<vmem>>, %arg3: memref<64x32xbf16, #tpu.memory_space<vmem>>, %arg4: memref<1x64x32xf32, #tpu.memory_space<vmem>>, %arg5: memref<10x10x32xf32, #tpu.memory_space<vmem>>, %arg6: memref<64x64xf32, #tpu.memory_space<vmem>>) attributes {dimension_semantics = [#tpu.dimension_semantics<parallel>], iteration_bounds = array<i64: 2>, scalar_prefetch = 0 : i64, scratch_operands = 2 : i64, tpu.core_type = #tpu.core_type<tc>, window_params = [{transform_indices = @transform_0, window_bounds = array<i64: 1, 8, 8, 32>}, {pipeline_mode = #tpu.pipeline_mode<synchronous>, transform_indices = @transform_1, window_bounds = array<i64: 3, 3, 32, 64>}, {pipeline_mode = #tpu.pipeline_mode<synchronous>, transform_indices = @transform_2, window_bounds = array<i64: 64, 32>}, {transform_indices = @transform_3, window_bounds = array<i64: 1, 64, 32>}]} {
    %c0 = arith.constant 0 : index
    %c0_0 = arith.constant 0 : index
    %c0_1 = arith.constant 0 : index
    %c0_2 = arith.constant 0 : index
    %0 = vector.load %arg1[%c0, %c0_0, %c0_1, %c0_2] : memref<1x8x8x32xf32, #tpu.memory_space<vmem>>, vector<1x8x8x32xf32>
    %1 = vector.shape_cast %0 : vector<1x8x8x32xf32> to vector<8x8x32xf32>
    %cst = arith.constant 0.000000e+00 : f32
    %2 = vector.broadcast %cst : f32 to vector<10x10x32xf32>
    %c0_3 = arith.constant 0 : index
    %c0_4 = arith.constant 0 : index
    %c0_5 = arith.constant 0 : index
    %3 = vector.load %arg5[%c0_3, %c0_4, %c0_5] : memref<10x10x32xf32, #tpu.memory_space<vmem>>, vector<10x10x32xf32>
    tpu.vector_store %arg5[%c0_3, %c0_4, %c0_5], %2 {strides = array<i32>} : memref<10x10x32xf32, #tpu.memory_space<vmem>>, vector<10x10x32xf32>,
    %cst_6 = arith.constant 0.000000e+00 : f32
    %4 = vector.broadcast %cst_6 : f32 to vector<8x8x32xf32>
    %5 = arith.maximumf %1, %4 : vector<8x8x32xf32>
    %c1 = arith.constant 1 : index
    %c1_7 = arith.constant 1 : index
    %c0_8 = arith.constant 0 : index
    %6 = vector.load %arg5[%c1, %c1_7, %c0_8] : memref<10x10x32xf32, #tpu.memory_space<vmem>>, vector<8x8x32xf32>
    tpu.vector_store %arg5[%c1, %c1_7, %c0_8], %5 {strides = array<i32>} : memref<10x10x32xf32, #tpu.memory_space<vmem>>, vector<8x8x32xf32>,
    %cst_9 = arith.constant 0.000000e+00 : f32
    %7 = vector.broadcast %cst_9 : f32 to vector<64x64xf32>
    %c0_10 = arith.constant 0 : index
    %c0_11 = arith.constant 0 : index
    %8 = vector.load %arg6[%c0_10, %c0_11] : memref<64x64xf32, #tpu.memory_space<vmem>>, vector<64x64xf32>
    tpu.vector_store %arg6[%c0_10, %c0_11], %7 {strides = array<i32>} : memref<64x64xf32, #tpu.memory_space<vmem>>, vector<64x64xf32>,
    %c0_12 = arith.constant 0 : index
    %c0_13 = arith.constant 0 : index
    %c0_14 = arith.constant 0 : index
    %9 = vector.load %arg5[%c0_12, %c0_13, %c0_14] : memref<10x10x32xf32, #tpu.memory_space<vmem>>, vector<8x8x32xf32>
    %10 = vector.shape_cast %9 : vector<8x8x32xf32> to vector<64x32xf32>
    %11 = arith.truncf %10 : vector<64x32xf32> to vector<64x32xbf16>
    %c0_15 = arith.constant 0 : index
    %c0_16 = arith.constant 0 : index
    %12 = vector.load %arg6[%c0_15, %c0_16] : memref<64x64xf32, #tpu.memory_space<vmem>>, vector<64x64xf32>
    %c0_17 = arith.constant 0 : index
    %c0_18 = arith.constant 0 : index
    %c0_19 = arith.constant 0 : index
    %c0_20 = arith.constant 0 : index
    %13 = vector.load %arg2[%c0_17, %c0_18, %c0_19, %c0_20] : memref<3x3x32x64xbf16, #tpu.memory_space<vmem>>, vector<1x1x32x64xbf16>
    %14 = vector.shape_cast %13 : vector<1x1x32x64xbf16> to vector<32x64xbf16>
    %cst_21 = arith.constant dense<0.000000e+00> : vector<64x64xf32>
    %15 = tpu.matmul %11, %14, %cst_21 {dimension_numbers = #tpu.dot_dimension_numbers<[1], [0], [0], [1], [0, 0, 1, 1], [], []>} : vector<64x32xbf16>, vector<32x64xbf16>, vector<64x64xf32> -> vector<64x64xf32>
    %16 = arith.addf %12, %15 : vector<64x64xf32>
    %c0_22 = arith.constant 0 : index
    %c0_23 = arith.constant 0 : index
    %17 = vector.load %arg6[%c0_22, %c0_23] : memref<64x64xf32, #tpu.memory_space<vmem>>, vector<64x64xf32>
    tpu.vector_store %arg6[%c0_22, %c0_23], %16 {strides = array<i32>} : memref<64x64xf32, #tpu.memory_space<vmem>>, vector<64x64xf32>,
    %c0_24 = arith.constant 0 : index
    %c1_25 = arith.constant 1 : index
    %c0_26 = arith.constant 0 : index
    %18 = vector.load %arg5[%c0_24, %c1_25, %c0_26] : memref<10x10x32xf32, #tpu.memory_space<vmem>>, vector<8x8x32xf32>
    %19 = vector.shape_cast %18 : vector<8x8x32xf32> to vector<64x32xf32>
    %20 = arith.truncf %19 : vector<64x32xf32> to vector<64x32xbf16>
    %c0_27 = arith.constant 0 : index
    %c0_28 = arith.constant 0 : index
    %21 = vector.load %arg6[%c0_27, %c0_28] : memref<64x64xf32, #tpu.memory_space<vmem>>, vector<64x64xf32>
    %c0_29 = arith.constant 0 : index
    %c1_30 = arith.constant 1 : index
    %c0_31 = arith.constant 0 : index
    %c0_32 = arith.constant 0 : index
    %22 = vector.load %arg2[%c0_29, %c1_30, %c0_31, %c0_32] : memref<3x3x32x64xbf16, #tpu.memory_space<vmem>>, vector<1x1x32x64xbf16>
    %23 = vector.shape_cast %22 : vector<1x1x32x64xbf16> to vector<32x64xbf16>
    %cst_33 = arith.constant dense<0.000000e+00> : vector<64x64xf32>
    %24 = tpu.matmul %20, %23, %cst_33 {dimension_numbers = #tpu.dot_dimension_numbers<[1], [0], [0], [1], [0, 0, 1, 1], [], []>} : vector<64x32xbf16>, vector<32x64xbf16>, vector<64x64xf32> -> vector<64x64xf32>
    %25 = arith.addf %21, %24 : vector<64x64xf32>
    %c0_34 = arith.constant 0 : index
    %c0_35 = arith.constant 0 : index
    %26 = vector.load %arg6[%c0_34, %c0_35] : memref<64x64xf32, #tpu.memory_space<vmem>>, vector<64x64xf32>
    tpu.vector_store %arg6[%c0_34, %c0_35], %25 {strides = array<i32>} : memref<64x64xf32, #tpu.memory_space<vmem>>, vector<64x64xf32>,
    %c0_36 = arith.constant 0 : index
    %c2 = arith.constant 2 : index
    %c0_37 = arith.constant 0 : index
    %27 = vector.load %arg5[%c0_36, %c2, %c0_37] : memref<10x10x32xf32, #tpu.memory_space<vmem>>, vector<8x8x32xf32>
    %28 = vector.shape_cast %27 : vector<8x8x32xf32> to vector<64x32xf32>
    %29 = arith.truncf %28 : vector<64x32xf32> to vector<64x32xbf16>
    %c0_38 = arith.constant 0 : index
    %c0_39 = arith.constant 0 : index
    %30 = vector.load %arg6[%c0_38, %c0_39] : memref<64x64xf32, #tpu.memory_space<vmem>>, vector<64x64xf32>
    %c0_40 = arith.constant 0 : index
    %c2_41 = arith.constant 2 : index
    %c0_42 = arith.constant 0 : index
    %c0_43 = arith.constant 0 : index
    %31 = vector.load %arg2[%c0_40, %c2_41, %c0_42, %c0_43] : memref<3x3x32x64xbf16, #tpu.memory_space<vmem>>, vector<1x1x32x64xbf16>
    %32 = vector.shape_cast %31 : vector<1x1x32x64xbf16> to vector<32x64xbf16>
    %cst_44 = arith.constant dense<0.000000e+00> : vector<64x64xf32>
    %33 = tpu.matmul %29, %32, %cst_44 {dimension_numbers = #tpu.dot_dimension_numbers<[1], [0], [0], [1], [0, 0, 1, 1], [], []>} : vector<64x32xbf16>, vector<32x64xbf16>, vector<64x64xf32> -> vector<64x64xf32>
    %34 = arith.addf %30, %33 : vector<64x64xf32>
    %c0_45 = arith.constant 0 : index
    %c0_46 = arith.constant 0 : index
    %35 = vector.load %arg6[%c0_45, %c0_46] : memref<64x64xf32, #tpu.memory_space<vmem>>, vector<64x64xf32>
    tpu.vector_store %arg6[%c0_45, %c0_46], %34 {strides = array<i32>} : memref<64x64xf32, #tpu.memory_space<vmem>>, vector<64x64xf32>,
    %c1_47 = arith.constant 1 : index
    %c0_48 = arith.constant 0 : index
    %c0_49 = arith.constant 0 : index
    %36 = vector.load %arg5[%c1_47, %c0_48, %c0_49] : memref<10x10x32xf32, #tpu.memory_space<vmem>>, vector<8x8x32xf32>
    %37 = vector.shape_cast %36 : vector<8x8x32xf32> to vector<64x32xf32>
    %38 = arith.truncf %37 : vector<64x32xf32> to vector<64x32xbf16>
    %c0_50 = arith.constant 0 : index
    %c0_51 = arith.constant 0 : index
    %39 = vector.load %arg6[%c0_50, %c0_51] : memref<64x64xf32, #tpu.memory_space<vmem>>, vector<64x64xf32>
    %c1_52 = arith.constant 1 : index
    %c0_53 = arith.constant 0 : index
    %c0_54 = arith.constant 0 : index
    %c0_55 = arith.constant 0 : index
    %40 = vector.load %arg2[%c1_52, %c0_53, %c0_54, %c0_55] : memref<3x3x32x64xbf16, #tpu.memory_space<vmem>>, vector<1x1x32x64xbf16>
    %41 = vector.shape_cast %40 : vector<1x1x32x64xbf16> to vector<32x64xbf16>
    %cst_56 = arith.constant dense<0.000000e+00> : vector<64x64xf32>
    %42 = tpu.matmul %38, %41, %cst_56 {dimension_numbers = #tpu.dot_dimension_numbers<[1], [0], [0], [1], [0, 0, 1, 1], [], []>} : vector<64x32xbf16>, vector<32x64xbf16>, vector<64x64xf32> -> vector<64x64xf32>
    %43 = arith.addf %39, %42 : vector<64x64xf32>
    %c0_57 = arith.constant 0 : index
    %c0_58 = arith.constant 0 : index
    %44 = vector.load %arg6[%c0_57, %c0_58] : memref<64x64xf32, #tpu.memory_space<vmem>>, vector<64x64xf32>
    tpu.vector_store %arg6[%c0_57, %c0_58], %43 {strides = array<i32>} : memref<64x64xf32, #tpu.memory_space<vmem>>, vector<64x64xf32>,
    %c1_59 = arith.constant 1 : index
    %c1_60 = arith.constant 1 : index
    %c0_61 = arith.constant 0 : index
    %45 = vector.load %arg5[%c1_59, %c1_60, %c0_61] : memref<10x10x32xf32, #tpu.memory_space<vmem>>, vector<8x8x32xf32>
    %46 = vector.shape_cast %45 : vector<8x8x32xf32> to vector<64x32xf32>
    %47 = arith.truncf %46 : vector<64x32xf32> to vector<64x32xbf16>
    %c0_62 = arith.constant 0 : index
    %c0_63 = arith.constant 0 : index
    %48 = vector.load %arg6[%c0_62, %c0_63] : memref<64x64xf32, #tpu.memory_space<vmem>>, vector<64x64xf32>
    %c1_64 = arith.constant 1 : index
    %c1_65 = arith.constant 1 : index
    %c0_66 = arith.constant 0 : index
    %c0_67 = arith.constant 0 : index
    %49 = vector.load %arg2[%c1_64, %c1_65, %c0_66, %c0_67] : memref<3x3x32x64xbf16, #tpu.memory_space<vmem>>, vector<1x1x32x64xbf16>
    %50 = vector.shape_cast %49 : vector<1x1x32x64xbf16> to vector<32x64xbf16>
    %cst_68 = arith.constant dense<0.000000e+00> : vector<64x64xf32>
    %51 = tpu.matmul %47, %50, %cst_68 {dimension_numbers = #tpu.dot_dimension_numbers<[1], [0], [0], [1], [0, 0, 1, 1], [], []>} : vector<64x32xbf16>, vector<32x64xbf16>, vector<64x64xf32> -> vector<64x64xf32>
    %52 = arith.addf %48, %51 : vector<64x64xf32>
    %c0_69 = arith.constant 0 : index
    %c0_70 = arith.constant 0 : index
    %53 = vector.load %arg6[%c0_69, %c0_70] : memref<64x64xf32, #tpu.memory_space<vmem>>, vector<64x64xf32>
    tpu.vector_store %arg6[%c0_69, %c0_70], %52 {strides = array<i32>} : memref<64x64xf32, #tpu.memory_space<vmem>>, vector<64x64xf32>,
    %c1_71 = arith.constant 1 : index
    %c2_72 = arith.constant 2 : index
    %c0_73 = arith.constant 0 : index
    %54 = vector.load %arg5[%c1_71, %c2_72, %c0_73] : memref<10x10x32xf32, #tpu.memory_space<vmem>>, vector<8x8x32xf32>
    %55 = vector.shape_cast %54 : vector<8x8x32xf32> to vector<64x32xf32>
    %56 = arith.truncf %55 : vector<64x32xf32> to vector<64x32xbf16>
    %c0_74 = arith.constant 0 : index
    %c0_75 = arith.constant 0 : index
    %57 = vector.load %arg6[%c0_74, %c0_75] : memref<64x64xf32, #tpu.memory_space<vmem>>, vector<64x64xf32>
    %c1_76 = arith.constant 1 : index
    %c2_77 = arith.constant 2 : index
    %c0_78 = arith.constant 0 : index
    %c0_79 = arith.constant 0 : index
    %58 = vector.load %arg2[%c1_76, %c2_77, %c0_78, %c0_79] : memref<3x3x32x64xbf16, #tpu.memory_space<vmem>>, vector<1x1x32x64xbf16>
    %59 = vector.shape_cast %58 : vector<1x1x32x64xbf16> to vector<32x64xbf16>
    %cst_80 = arith.constant dense<0.000000e+00> : vector<64x64xf32>
    %60 = tpu.matmul %56, %59, %cst_80 {dimension_numbers = #tpu.dot_dimension_numbers<[1], [0], [0], [1], [0, 0, 1, 1], [], []>} : vector<64x32xbf16>, vector<32x64xbf16>, vector<64x64xf32> -> vector<64x64xf32>
    %61 = arith.addf %57, %60 : vector<64x64xf32>
    %c0_81 = arith.constant 0 : index
    %c0_82 = arith.constant 0 : index
    %62 = vector.load %arg6[%c0_81, %c0_82] : memref<64x64xf32, #tpu.memory_space<vmem>>, vector<64x64xf32>
    tpu.vector_store %arg6[%c0_81, %c0_82], %61 {strides = array<i32>} : memref<64x64xf32, #tpu.memory_space<vmem>>, vector<64x64xf32>,
    %c2_83 = arith.constant 2 : index
    %c0_84 = arith.constant 0 : index
    %c0_85 = arith.constant 0 : index
    %63 = vector.load %arg5[%c2_83, %c0_84, %c0_85] : memref<10x10x32xf32, #tpu.memory_space<vmem>>, vector<8x8x32xf32>
    %64 = vector.shape_cast %63 : vector<8x8x32xf32> to vector<64x32xf32>
    %65 = arith.truncf %64 : vector<64x32xf32> to vector<64x32xbf16>
    %c0_86 = arith.constant 0 : index
    %c0_87 = arith.constant 0 : index
    %66 = vector.load %arg6[%c0_86, %c0_87] : memref<64x64xf32, #tpu.memory_space<vmem>>, vector<64x64xf32>
    %c2_88 = arith.constant 2 : index
    %c0_89 = arith.constant 0 : index
    %c0_90 = arith.constant 0 : index
    %c0_91 = arith.constant 0 : index
    %67 = vector.load %arg2[%c2_88, %c0_89, %c0_90, %c0_91] : memref<3x3x32x64xbf16, #tpu.memory_space<vmem>>, vector<1x1x32x64xbf16>
    %68 = vector.shape_cast %67 : vector<1x1x32x64xbf16> to vector<32x64xbf16>
    %cst_92 = arith.constant dense<0.000000e+00> : vector<64x64xf32>
    %69 = tpu.matmul %65, %68, %cst_92 {dimension_numbers = #tpu.dot_dimension_numbers<[1], [0], [0], [1], [0, 0, 1, 1], [], []>} : vector<64x32xbf16>, vector<32x64xbf16>, vector<64x64xf32> -> vector<64x64xf32>
    %70 = arith.addf %66, %69 : vector<64x64xf32>
    %c0_93 = arith.constant 0 : index
    %c0_94 = arith.constant 0 : index
    %71 = vector.load %arg6[%c0_93, %c0_94] : memref<64x64xf32, #tpu.memory_space<vmem>>, vector<64x64xf32>
    tpu.vector_store %arg6[%c0_93, %c0_94], %70 {strides = array<i32>} : memref<64x64xf32, #tpu.memory_space<vmem>>, vector<64x64xf32>,
    %c2_95 = arith.constant 2 : index
    %c1_96 = arith.constant 1 : index
    %c0_97 = arith.constant 0 : index
    %72 = vector.load %arg5[%c2_95, %c1_96, %c0_97] : memref<10x10x32xf32, #tpu.memory_space<vmem>>, vector<8x8x32xf32>
    %73 = vector.shape_cast %72 : vector<8x8x32xf32> to vector<64x32xf32>
    %74 = arith.truncf %73 : vector<64x32xf32> to vector<64x32xbf16>
    %c0_98 = arith.constant 0 : index
    %c0_99 = arith.constant 0 : index
    %75 = vector.load %arg6[%c0_98, %c0_99] : memref<64x64xf32, #tpu.memory_space<vmem>>, vector<64x64xf32>
    %c2_100 = arith.constant 2 : index
    %c1_101 = arith.constant 1 : index
    %c0_102 = arith.constant 0 : index
    %c0_103 = arith.constant 0 : index
    %76 = vector.load %arg2[%c2_100, %c1_101, %c0_102, %c0_103] : memref<3x3x32x64xbf16, #tpu.memory_space<vmem>>, vector<1x1x32x64xbf16>
    %77 = vector.shape_cast %76 : vector<1x1x32x64xbf16> to vector<32x64xbf16>
    %cst_104 = arith.constant dense<0.000000e+00> : vector<64x64xf32>
    %78 = tpu.matmul %74, %77, %cst_104 {dimension_numbers = #tpu.dot_dimension_numbers<[1], [0], [0], [1], [0, 0, 1, 1], [], []>} : vector<64x32xbf16>, vector<32x64xbf16>, vector<64x64xf32> -> vector<64x64xf32>
    %79 = arith.addf %75, %78 : vector<64x64xf32>
    %c0_105 = arith.constant 0 : index
    %c0_106 = arith.constant 0 : index
    %80 = vector.load %arg6[%c0_105, %c0_106] : memref<64x64xf32, #tpu.memory_space<vmem>>, vector<64x64xf32>
    tpu.vector_store %arg6[%c0_105, %c0_106], %79 {strides = array<i32>} : memref<64x64xf32, #tpu.memory_space<vmem>>, vector<64x64xf32>,
    %c2_107 = arith.constant 2 : index
    %c2_108 = arith.constant 2 : index
    %c0_109 = arith.constant 0 : index
    %81 = vector.load %arg5[%c2_107, %c2_108, %c0_109] : memref<10x10x32xf32, #tpu.memory_space<vmem>>, vector<8x8x32xf32>
    %82 = vector.shape_cast %81 : vector<8x8x32xf32> to vector<64x32xf32>
    %83 = arith.truncf %82 : vector<64x32xf32> to vector<64x32xbf16>
    %c0_110 = arith.constant 0 : index
    %c0_111 = arith.constant 0 : index
    %84 = vector.load %arg6[%c0_110, %c0_111] : memref<64x64xf32, #tpu.memory_space<vmem>>, vector<64x64xf32>
    %c2_112 = arith.constant 2 : index
    %c2_113 = arith.constant 2 : index
    %c0_114 = arith.constant 0 : index
    %c0_115 = arith.constant 0 : index
    %85 = vector.load %arg2[%c2_112, %c2_113, %c0_114, %c0_115] : memref<3x3x32x64xbf16, #tpu.memory_space<vmem>>, vector<1x1x32x64xbf16>
    %86 = vector.shape_cast %85 : vector<1x1x32x64xbf16> to vector<32x64xbf16>
    %cst_116 = arith.constant dense<0.000000e+00> : vector<64x64xf32>
    %87 = tpu.matmul %83, %86, %cst_116 {dimension_numbers = #tpu.dot_dimension_numbers<[1], [0], [0], [1], [0, 0, 1, 1], [], []>} : vector<64x32xbf16>, vector<32x64xbf16>, vector<64x64xf32> -> vector<64x64xf32>
    %88 = arith.addf %84, %87 : vector<64x64xf32>
    %c0_117 = arith.constant 0 : index
    %c0_118 = arith.constant 0 : index
    %89 = vector.load %arg6[%c0_117, %c0_118] : memref<64x64xf32, #tpu.memory_space<vmem>>, vector<64x64xf32>
    tpu.vector_store %arg6[%c0_117, %c0_118], %88 {strides = array<i32>} : memref<64x64xf32, #tpu.memory_space<vmem>>, vector<64x64xf32>,
    %c0_119 = arith.constant 0 : index
    %c0_120 = arith.constant 0 : index
    %90 = vector.load %arg6[%c0_119, %c0_120] : memref<64x64xf32, #tpu.memory_space<vmem>>, vector<64x64xf32>
    %cst_121 = arith.constant 0.000000e+00 : f32
    %91 = vector.broadcast %cst_121 : f32 to vector<64x64xf32>
    %92 = arith.maximumf %90, %91 : vector<64x64xf32>
    %93 = arith.truncf %92 : vector<64x64xf32> to vector<64x64xbf16>
    %c0_122 = arith.constant 0 : index
    %c0_123 = arith.constant 0 : index
    %94 = vector.load %arg3[%c0_122, %c0_123] : memref<64x32xbf16, #tpu.memory_space<vmem>>, vector<64x32xbf16>
    %cst_124 = arith.constant dense<0.000000e+00> : vector<64x32xf32>
    %95 = tpu.matmul %93, %94, %cst_124 {dimension_numbers = #tpu.dot_dimension_numbers<[1], [0], [0], [1], [0, 0, 1, 1], [], []>} : vector<64x64xbf16>, vector<64x32xbf16>, vector<64x32xf32> -> vector<64x32xf32>
    %96 = vector.shape_cast %1 : vector<8x8x32xf32> to vector<64x32xf32>
    %97 = arith.addf %96, %95 : vector<64x32xf32>
    %c0_125 = arith.constant 0 : index
    %c0_126 = arith.constant 0 : index
    %c0_127 = arith.constant 0 : index
    %98 = vector.load %arg4[%c0_125, %c0_126, %c0_127] : memref<1x64x32xf32, #tpu.memory_space<vmem>>, vector<1x64x32xf32>
    %99 = vector.shape_cast %98 : vector<1x64x32xf32> to vector<64x32xf32>
    %100 = vector.shape_cast %97 : vector<64x32xf32> to vector<1x64x32xf32>
    tpu.vector_store %arg4[%c0_125, %c0_126, %c0_127], %100 {strides = array<i32>} : memref<1x64x32xf32, #tpu.memory_space<vmem>>, vector<1x64x32xf32>,
    return
  }
  func.func @transform_0(%arg0: i32) -> (i32, i32, i32, i32) {
    %c0_i32 = arith.constant 0 : i32
    %c0_i32_0 = arith.constant 0 : i32
    %c0_i32_1 = arith.constant 0 : i32
    %c0_i32_2 = arith.constant 0 : i32
    return %arg0, %c0_i32, %c0_i32_0, %c0_i32_1 : i32, i32, i32, i32
  }
  func.func @transform_1(%arg0: i32) -> (i32, i32, i32, i32) {
    %c0_i32 = arith.constant 0 : i32
    %c0_i32_0 = arith.constant 0 : i32
    %c0_i32_1 = arith.constant 0 : i32
    %c0_i32_2 = arith.constant 0 : i32
    %c0_i32_3 = arith.constant 0 : i32
    return %c0_i32, %c0_i32_0, %c0_i32_1, %c0_i32_2 : i32, i32, i32, i32
  }
  func.func @transform_2(%arg0: i32) -> (i32, i32) {
    %c0_i32 = arith.constant 0 : i32
    %c0_i32_0 = arith.constant 0 : i32
    %c0_i32_1 = arith.constant 0 : i32
    return %c0_i32, %c0_i32_0 : i32, i32
  }
  func.func @transform_3(%arg0: i32) -> (i32, i32, i32) {
    %c0_i32 = arith.constant 0 : i32
    %c0_i32_0 = arith.constant 0 : i32
    %c0_i32_1 = arith.constant 0 : i32
    return %arg0, %c0_i32, %c0_i32_0 : i32, i32, i32
  }
}

</mosaic_0001>

<llo_original>
// kernel: tpu_custom_call.1
$region0: #{tpu_custom_call.1}
  #allocation0 [shape = 'u32[]', space=smem, size = 0x4, offset = 0x4, fixed_abs, tag = 'smem constant byte address 0x4 - core index']
  #allocation1 [shape = 'u32[144,128]{1,0:T(1,128)}', space=vmem, size = 0x12000, scoped, tag = 'internal scratch']
  #allocation2 [shape = 'f32[10,10,32]{2,1,0:T(8,128)}', space=vmem, size = 0x14000, scoped, tag = 'scratch operand']
  #allocation3 [shape = 'f32[64,64]{1,0:T(8,128)}', space=vmem, size = 0x8000, scoped, tag = 'scratch operand']
  %s0 = inlined_call_operand.hbm [shape: f32[2,8,8,32], index: 0, kind: input, shape index: {}]
  %s1 = inlined_call_operand.hbm [shape: bf16[3,3,32,64], index: 1, kind: input, shape index: {}]
  %s2 = inlined_call_operand.vmem [shape: bf16[64,32], index: 2, kind: input, shape index: {}]
  %s3 = inlined_call_operand.vmem [shape: f32[2,64,32], index: 3, kind: output, shape index: {}]
  %s4 = sld [smem:[#allocation0]]
  $region53: #{tpu_custom_call.1} parent=0
    _
  %s6 = ssub.s32 1, %s4
  %s7 = scalar_select 0, %s6, %s4
  $region1: #{tpu_custom_call.1} parent=0
    #allocation4 [shape = 'u8[65536]{0}', space=vmem, size = 0x10000, scoped, tag = 'input window, operand 0']
    #allocation5 [shape = 's32[2]{0}', space=sflag, size = 0x8, scoped, tag = 'scoped memory for tpu_custom_call.1']
    #allocation6 [shape = 'u8[73728]{0}', space=vmem, size = 0x12000, scoped, tag = 'input window, operand 1, single buffered']
    #allocation7 [shape = 's32[1]{0}', space=sflag, size = 0x4, scoped, tag = 'scoped memory for tpu_custom_call.1']
    %8 = vsyncpa [#allocation5], 0
    %s9 = scalar_lea.sflag [#allocation5], 1
    %10 = vsyncpa %s9, 0
    %11 = vsyncpa [#allocation7], 0
    loop: start=0, step=1, limit=4
    $region2: #{tpu_custom_call.1} parent=1 // loop_pre_header
      _
    $region3: #{tpu_custom_call.1} parent=1 // loop_header
      %s13 = sphi 0, %s17
      %p14 = scmp.ge.s32.totalorder %s13, 4
      %s23 = sphi 0, %s25
      %s26 = sphi 0, %s23
      %s27 = sphi 0, %s26
      %s43 = sphi 0, %s27
      %s47 = sphi 0, %s47
      %s49 = sphi 0, %s47
      %s50 = sphi 0, %s49
      %s64 = sphi 0, %s50
      %s68 = sphi 0, %s68
      %s70 = sphi 0, %s68
      %s71 = sphi 0, %s70
      %s85 = sphi 0, %s71
      %s91 = sphi 0, %s93
      %s94 = sphi 0, %s91
      %s95 = sphi 0, %s94
      %s111 = sphi 0, %s95
    $region4: #{tpu_custom_call.1} parent=1 // loop_header_branch
      %16 = sbr.rel (%p14) target = $region8
    $region5: #{tpu_custom_call.1} parent=1 // loop_body
      %s18 = ssub.s32 %s13, 1
      %s19 = ssub.s32 %s13, 2
      %s20 = sadd.s32 %s13, 1
      %s21 = ssub.s32 %s13, %s20
      %p22 = scmp.eq.s32.totalorder %s21, 0
      %s24 = sadd.s32 %s23, 1
      %s25 = scalar_select %p22, %s23, %s24
      %p28 = pneg %p22
      %p29 = scmp.eq.s32.totalorder %s13, 1
      %p30 = por %p28, %p29
      %p31 = scmp.ne.s32.totalorder %s23, %s26
      %p32 = scmp.eq.s32.totalorder %s13, 0
      %p33 = por %p31, %p32
      %p34 = scmp.ne.s32.totalorder %s23, %s26
      %p35 = scmp.eq.s32.totalorder %s18, 1
      %p36 = por %p34, %p35
      %p37 = scmp.ne.s32.totalorder %s26, %s27
      %p38 = scmp.eq.s32.totalorder %s18, 0
      %p39 = por %p37, %p38
      %p40 = scmp.ne.s32.totalorder %s26, %s27
      %p41 = scmp.eq.s32.totalorder %s19, 1
      %p42 = por %p40, %p41
      %p44 = scmp.ne.s32.totalorder %s27, %s43
      %p45 = scmp.eq.s32.totalorder %s19, 0
      %p46 = por %p44, %p45
      %s48 = sadd.s32 %s47, 1
      %p51 = scmp.eq.s32.totalorder %s13, 1
      %p52 = scmp.ne.s32.totalorder %s47, %s49
      %p53 = scmp.eq.s32.totalorder %s13, 0
      %p54 = por %p52, %p53
      %p55 = scmp.ne.s32.totalorder %s47, %s49
      %p56 = scmp.eq.s32.totalorder %s18, 1
      %p57 = por %p55, %p56
      %p58 = scmp.ne.s32.totalorder %s49, %s50
      %p59 = scmp.eq.s32.totalorder %s18, 0
      %p60 = por %p58, %p59
      %p61 = scmp.ne.s32.totalorder %s49, %s50
      %p62 = scmp.eq.s32.totalorder %s19, 1
      %p63 = por %p61, %p62
      %p65 = scmp.ne.s32.totalorder %s50, %s64
      %p66 = scmp.eq.s32.totalorder %s19, 0
      %p67 = por %p65, %p66
      %s69 = sadd.s32 %s68, 1
      %p72 = scmp.eq.s32.totalorder %s13, 1
      %p73 = scmp.ne.s32.totalorder %s68, %s70
      %p74 = scmp.eq.s32.totalorder %s13, 0
      %p75 = por %p73, %p74
      %p76 = scmp.ne.s32.totalorder %s68, %s70
      %p77 = scmp.eq.s32.totalorder %s18, 1
      %p78 = por %p76, %p77
      %p79 = scmp.ne.s32.totalorder %s70, %s71
      %p80 = scmp.eq.s32.totalorder %s18, 0
      %p81 = por %p79, %p80
      %p82 = scmp.ne.s32.totalorder %s70, %s71
      %p83 = scmp.eq.s32.totalorder %s19, 1
      %p84 = por %p82, %p83
      %p86 = scmp.ne.s32.totalorder %s71, %s85
      %p87 = scmp.eq.s32.totalorder %s19, 0
      %p88 = por %p86, %p87
      %s89 = ssub.s32 %s13, %s20
      %p90 = scmp.eq.s32.totalorder %s89, 0
      %s92 = sadd.s32 %s91, 1
      %s93 = scalar_select %p90, %s91, %s92
      %p96 = pneg %p90
      %p97 = scmp.eq.s32.totalorder %s13, 1
      %p98 = por %p96, %p97
      %p99 = scmp.ne.s32.totalorder %s91, %s94
      %p100 = scmp.eq.s32.totalorder %s13, 0
      %p101 = por %p99, %p100
      %p102 = scmp.ne.s32.totalorder %s91, %s94
      %p103 = scmp.eq.s32.totalorder %s18, 1
      %p104 = por %p102, %p103
      %p105 = scmp.ne.s32.totalorder %s94, %s95
      %p106 = scmp.eq.s32.totalorder %s18, 0
      %p107 = por %p105, %p106
      %p108 = scmp.ne.s32.totalorder %s94, %s95
      %p109 = scmp.eq.s32.totalorder %s19, 1
      %p110 = por %p108, %p109
      %p112 = scmp.ne.s32.totalorder %s95, %s111
      %p113 = scmp.eq.s32.totalorder %s19, 0
      %p114 = por %p112, %p113
      %p115 = scmp.le.s32.totalorder 1, %s13
      %p116 = scmp.lt.s32.totalorder %s13, 3
      %p117 = pnand %p115, %p116
      %p118 = pneg %p117
      // Predicated region
      $region9: #{tpu_custom_call.1} parent=5 // pred_check
        _
      $region10: #{tpu_custom_call.1} parent=5 // pred_check_branch
        %120 = sbr.rel (%p117) target = $region12
      $region11: #{tpu_custom_call.1} parent=5 // pred_region
        %s121 = ssub.s32 %s13, 1
        // Predicated region
        $region13: #{tpu_custom_call.1} parent=11 // pred_check
          %p122 = pneg %p60
        $region14: #{tpu_custom_call.1} parent=11 // pred_check_branch
          %124 = sbr.rel (%p122) target = $region16
        $region15: #{tpu_custom_call.1} parent=11 // pred_region
          %s126 = ssub.s32 2304, 2304
          %127 = vsyncadd [#allocation7], %s126
          %s128 = sshll.u32 [#allocation6], 4
          %s129 = int_to_ptr.vmem [resolvable:$true] %s128
          %134 = dma.hbm_to_vmem [thread:$0]  %s1, 2304, %s129, [#allocation7], 64, 64, 4
        $region16: #{tpu_custom_call.1} parent=11 // pred_fallthru
          _
        // Predicated region
        $region17: #{tpu_custom_call.1} parent=11 // pred_check
          %p135 = pneg %p81
        $region18: #{tpu_custom_call.1} parent=11 // pred_check_branch
          %137 = sbr.rel (%p135) target = $region20
        $region19: #{tpu_custom_call.1} parent=11 // pred_region
          _
        $region20: #{tpu_custom_call.1} parent=11 // pred_fallthru
          _
      $region12: #{tpu_custom_call.1} parent=5 // pred_fallthru
        _
      %p138 = scmp.lt.s32.totalorder %s13, 2
      // Predicated region
      $region21: #{tpu_custom_call.1} parent=5 // pred_check
        %p139 = pneg %p138
      $region22: #{tpu_custom_call.1} parent=5 // pred_check_branch
        %141 = sbr.rel (%p139) target = $region24
      $region23: #{tpu_custom_call.1} parent=5 // pred_region
        // Predicated region
        $region25: #{tpu_custom_call.1} parent=23 // pred_check
          %p142 = pneg %p33
        $region26: #{tpu_custom_call.1} parent=23 // pred_check_branch
          %144 = sbr.rel (%p142) target = $region28
        $region27: #{tpu_custom_call.1} parent=23 // pred_region
          %s145 = sand.u32 %s23, 1
          %s146 = scalar_lea.sflag [#allocation5], %s145
          %s147 = sand.u32 %s23, 1
          %s148 = smul.addr %s147, 64
          %s149 = scalar_lea.vmem [#allocation4], %s148
          %s151 = ssub.s32 1024, 1024
          %152 = vsyncadd %s146, %s151
          %s153 = smul.addr %s13, 8
          %s154 = smul.addr %s153, 128
          %s155 = scalar_lea.hbm %s0, %s154
          %s156 = sshll.u32 %s149, 4
          %s157 = int_to_ptr.vmem [resolvable:$true] %s156
          %162 = dma.hbm_to_vmem [thread:$0]  %s155, 1024, %s157, %s146, 128, 128, 8
        $region28: #{tpu_custom_call.1} parent=23 // pred_fallthru
          _
      $region24: #{tpu_custom_call.1} parent=5 // pred_fallthru
        _
      %p163 = scmp.le.s32.totalorder 1, %s13
      %p164 = scmp.lt.s32.totalorder %s13, 3
      %p165 = pnand %p163, %p164
      %p166 = pneg %p165
      // Predicated region
      $region29: #{tpu_custom_call.1} parent=5 // pred_check
        _
      $region30: #{tpu_custom_call.1} parent=5 // pred_check_branch
        %168 = sbr.rel (%p165) target = $region32
      $region31: #{tpu_custom_call.1} parent=5 // pred_region
        %s169 = ssub.s32 %s13, 1
        %s170 = sand.u32 %s26, 1
        %s171 = scalar_lea.sflag [#allocation5], %s170
        %s172 = sand.u32 %s26, 1
        %s173 = smul.addr %s172, 64
        %s174 = scalar_lea.vmem [#allocation4], %s173
        // Predicated region
        $region33: #{tpu_custom_call.1} parent=31 // pred_check
          %p175 = pneg %p39
        $region34: #{tpu_custom_call.1} parent=31 // pred_check_branch
          %177 = sbr.rel (%p175) target = $region36
        $region35: #{tpu_custom_call.1} parent=31 // pred_region
          %178 = dma.done %s171, 1024
        $region36: #{tpu_custom_call.1} parent=31 // pred_fallthru
          _
        // Predicated region
        $region37: #{tpu_custom_call.1} parent=31 // pred_check
          %p179 = pneg %p60
        $region38: #{tpu_custom_call.1} parent=31 // pred_check_branch
          %181 = sbr.rel (%p179) target = $region40
        $region39: #{tpu_custom_call.1} parent=31 // pred_region
          %182 = dma.done [#allocation7], 2304
        $region40: #{tpu_custom_call.1} parent=31 // pred_fallthru
          _
        %s183 = sand.u32 %s26, 1
        %s184 = scalar_lea.sflag [#allocation5], %s183
        %s185 = sand.u32 %s26, 1
        %s186 = smul.addr %s185, 64
        %s187 = scalar_lea.vmem [#allocation4], %s186
        %p188 = pneg %p39
        %p189 = pneg %p36
        %p190 = pneg %p60
        %p191 = pneg %p57
        %p192 = pneg %p81
        %p193 = pneg %p78
        %p194 = pneg %p107
        %p195 = pneg %p104
        %p196 = scmp.lt.s32.totalorder %s18, 1
        %s197 = scalar_select %p196, %s18, 1
        %s198 = smul.addr %s197, 8
        %s199 = smul.addr %s198, 8
        %s200 = scalar_lea.vmem %s3, %s199
        %p201 = scmp.lt.s32.totalorder %s18, 1
        %s202 = scalar_select %p201, %s18, 1
        %s203 = smul.addr %s202, 8
        %s204 = smul.addr %s203, 8
        %s205 = scalar_lea.vmem %s3, %s204
        %v207 = vld [vmem:[%s174] sm:$0xff]
        %v208 = vld [vmem:[%s174 + $0x8] sm:$0xff]
        %v209 = vld [vmem:[%s174 + $0x10] sm:$0xff]
        %v210 = vld [vmem:[%s174 + $0x18] sm:$0xff]
        %v211 = vld [vmem:[%s174 + $0x20] sm:$0xff]
        %v212 = vld [vmem:[%s174 + $0x28] sm:$0xff]
        %v213 = vld [vmem:[%s174 + $0x30] sm:$0xff]
        %v214 = vld [vmem:[%s174 + $0x38] sm:$0xff]
        %vm215 = vcmask 261120
        %216 = vst.msk [vmem:[#allocation2] sm:$0xff] %vm215, 0.0
        %vm217 = vcmask 254976
        %218 = vst.msk [vmem:[#allocation2 + $0x8] sm:$0x3] %vm217, 0.0
        %219 = vst.msk [vmem:[#allocation2 + $0x10] sm:$0xff] %vm215, 0.0
        %220 = vst.msk [vmem:[#allocation2 + $0x18] sm:$0x3] %vm217, 0.0
        %221 = vst.msk [vmem:[#allocation2 + $0x20] sm:$0xff] %vm215, 0.0
        %222 = vst.msk [vmem:[#allocation2 + $0x28] sm:$0x3] %vm217, 0.0
        %223 = vst.msk [vmem:[#allocation2 + $0x30] sm:$0xff] %vm215, 0.0
        %224 = vst.msk [vmem:[#allocation2 + $0x38] sm:$0x3] %vm217, 0.0
        %225 = vst.msk [vmem:[#allocation2 + $0x40] sm:$0xff] %vm215, 0.0
        %226 = vst.msk [vmem:[#allocation2 + $0x48] sm:$0x3] %vm217, 0.0
        %227 = vst.msk [vmem:[#allocation2 + $0x50] sm:$0xff] %vm215, 0.0
        %228 = vst.msk [vmem:[#allocation2 + $0x58] sm:$0x3] %vm217, 0.0
        %229 = vst.msk [vmem:[#allocation2 + $0x60] sm:$0xff] %vm215, 0.0
        %230 = vst.msk [vmem:[#allocation2 + $0x68] sm:$0x3] %vm217, 0.0
        %231 = vst.msk [vmem:[#allocation2 + $0x70] sm:$0xff] %vm215, 0.0
        %232 = vst.msk [vmem:[#allocation2 + $0x78] sm:$0x3] %vm217, 0.0
        %233 = vst.msk [vmem:[#allocation2 + $0x80] sm:$0xff] %vm215, 0.0
        %234 = vst.msk [vmem:[#allocation2 + $0x88] sm:$0x3] %vm217, 0.0
        %235 = vst.msk [vmem:[#allocation2 + $0x90] sm:$0xff] %vm215, 0.0
        %236 = vst.msk [vmem:[#allocation2 + $0x98] sm:$0x3] %vm217, 0.0
        %v237 = vmax.f32 %v207, 0.0
        %v238 = vmax.f32 %v208, 0.0
        %v239 = vmax.f32 %v209, 0.0
        %v240 = vmax.f32 %v210, 0.0
        %v241 = vmax.f32 %v211, 0.0
        %v242 = vmax.f32 %v212, 0.0
        %v243 = vmax.f32 %v213, 0.0
        %v244 = vmax.f32 %v214, 0.0
        %s245 = scalar_lea.vmem [#allocation2], 16
        %246 = vst.msk [vmem:[%s245 + $0x1] sm:$0xff] %vm215, %v237
        %247 = vst.msk [vmem:[%s245 + $0x11] sm:$0xff] %vm215, %v238
        %248 = vst.msk [vmem:[%s245 + $0x21] sm:$0xff] %vm215, %v239
        %249 = vst.msk [vmem:[%s245 + $0x31] sm:$0xff] %vm215, %v240
        %250 = vst.msk [vmem:[%s245 + $0x41] sm:$0xff] %vm215, %v241
        %251 = vst.msk [vmem:[%s245 + $0x51] sm:$0xff] %vm215, %v242
        %252 = vst.msk [vmem:[%s245 + $0x61] sm:$0xff] %vm215, %v243
        %253 = vst.msk [vmem:[%s245 + $0x71] sm:$0xff] %vm215, %v244
        %vm254 = vcmask 523264
        %255 = vst.msk [vmem:[#allocation3] sm:$0xff] %vm254, 0.0
        %256 = vst.msk [vmem:[#allocation3 + $0x8] sm:$0xff] %vm254, 0.0
        %257 = vst.msk [vmem:[#allocation3 + $0x10] sm:$0xff] %vm254, 0.0
        %258 = vst.msk [vmem:[#allocation3 + $0x18] sm:$0xff] %vm254, 0.0
        %259 = vst.msk [vmem:[#allocation3 + $0x20] sm:$0xff] %vm254, 0.0
        %260 = vst.msk [vmem:[#allocation3 + $0x28] sm:$0xff] %vm254, 0.0
        %261 = vst.msk [vmem:[#allocation3 + $0x30] sm:$0xff] %vm254, 0.0
        %262 = vst.msk [vmem:[#allocation3 + $0x38] sm:$0xff] %vm254, 0.0
        %v263 = vld [vmem:[#allocation2] sm:$0xff]
        %v264 = vld [vmem:[#allocation2 + $0x10] sm:$0xff]
        %v265 = vld [vmem:[#allocation2 + $0x20] sm:$0xff]
        %v266 = vld [vmem:[#allocation2 + $0x30] sm:$0xff]
        %v267 = vld [vmem:[#allocation2 + $0x40] sm:$0xff]
        %v268 = vld [vmem:[#allocation2 + $0x50] sm:$0xff]
        %v269 = vld [vmem:[#allocation2 + $0x60] sm:$0xff]
        %v270 = vld [vmem:[#allocation2 + $0x70] sm:$0xff]
        %v271 = vpack.c.bf16 %v264, %v263
        %v272 = vpack.c.bf16 %v266, %v265
        %v273 = vpack.c.bf16 %v268, %v267
        %v274 = vpack.c.bf16 %v270, %v269
        %v275 = vld [vmem:[#allocation3] sm:$0xff]
        %v276 = vld [vmem:[#allocation3 + $0x8] sm:$0xff]
        %v277 = vld [vmem:[#allocation3 + $0x10] sm:$0xff]
        %v278 = vld [vmem:[#allocation3 + $0x18] sm:$0xff]
        %v279 = vld [vmem:[#allocation3 + $0x20] sm:$0xff]
        %v280 = vld [vmem:[#allocation3 + $0x28] sm:$0xff]
        %v281 = vld [vmem:[#allocation3 + $0x30] sm:$0xff]
        %v282 = vld [vmem:[#allocation3 + $0x38] sm:$0xff]
        %v283 = vld [vmem:[#allocation6] sm:$0xf]
        %v284 = vld [vmem:[#allocation6 + $0x4] sm:$0xf]
        %v285 = vld [vmem:[#allocation6 + $0x8] sm:$0xf]
        %v286 = vld [vmem:[#allocation6 + $0xc] sm:$0xf]
        %v291 = vunpack.c.l.b16 %v283
        %v292 = vunpack.c.l.b16 %v284
        %v293 = vunpack.c.l.b16 %v285
        %v294 = vunpack.c.l.b16 %v286
        %v295 = vpack.c.b16 %v292, %v291
        %v296 = vpack.c.b16 %v294, %v293
        %v300 = vsel %vm215, %v271, 0
        %v303 = vsel %vm215, %v272, 0
        %v306 = vsel %vm215, %v273, 0
        %v309 = vsel %vm215, %v274, 0
        %311 = vmatprep.subr.bf16.mxu0 0
        %312 = vmatpush1.bf16.msra.mxu0 %v295
        %313 = vmatprep.subr.bf16.mxu0 0
        %314 = vmatpush1.bf16.msra.mxu0 %v296
        %315 = vmatprep.subr.bf16.mxu0 0
        %316 = vmatpush1.bf16.msra.mxu0 0
        %317 = vmatprep.subr.bf16.mxu0 0
        %318 = vmatpush1.bf16.msra.mxu0 0
        %319 = vmatprep.subr.bf16.mxu0 0
        %320 = vmatpush1.bf16.msra.mxu0 0
        %321 = vmatprep.subr.bf16.mxu0 0
        %322 = vmatpush1.bf16.msra.mxu0 0
        %323 = vmatprep.subr.bf16.mxu0 0
        %324 = vmatpush1.bf16.msra.mxu0 0
        %325 = vmatprep.subr.bf16.mxu0 0
        %326 = vmatpush1.bf16.msra.mxu0 0
        %327 = vmatprep.subr.bf16.mxu0 0
        %328 = vmatpush1.bf16.msra.mxu0 0
        %329 = vmatprep.subr.bf16.mxu0 0
        %330 = vmatpush1.bf16.msra.mxu0 0
        %331 = vmatprep.subr.bf16.mxu0 0
        %332 = vmatpush1.bf16.msra.mxu0 0
        %333 = vmatprep.subr.bf16.mxu0 0
        %334 = vmatpush1.bf16.msra.mxu0 0
        %335 = vmatprep.subr.bf16.mxu0 0
        %336 = vmatpush1.bf16.msra.mxu0 0
        %337 = vmatprep.subr.bf16.mxu0 0
        %338 = vmatpush1.bf16.msra.mxu0 0
        %339 = vmatprep.subr.bf16.mxu0 0
        %340 = vmatpush1.bf16.msra.mxu0 0
        %341 = vmatprep.subr.bf16.mxu0 0
        %342 = vmatpush1.bf16.msra.mxu0 0
        %343 = vmatprep.mubr.bf16.mxu0 0
        %344 = vmatmul.mubr.bf16.gmra.mrb[0].mxu0 %v300
        %v345 = vpop.f32.mrb[0].mxu0
        %v346 = vadd.f32 0.0, %v345
        %v347 = vpop.f32.mrb[0].mxu0
        %v348 = vpop.f32.mrb[0].mxu0
        %v349 = vadd.f32 0.0, %v348
        %v350 = vpop.f32.mrb[0].mxu0
        %351 = vmatprep.mubr.bf16.mxu0 0
        %352 = vmatmul.mubr.bf16.gmra.mrb[0].mxu0 %v303
        %v353 = vpop.f32.mrb[0].mxu0
        %v354 = vadd.f32 0.0, %v353
        %v355 = vpop.f32.mrb[0].mxu0
        %v356 = vpop.f32.mrb[0].mxu0
        %v357 = vadd.f32 0.0, %v356
        %v358 = vpop.f32.mrb[0].mxu0
        %359 = vmatprep.mubr.bf16.mxu0 0
        %360 = vmatmul.mubr.bf16.gmra.mrb[0].mxu0 %v306
        %v361 = vpop.f32.mrb[0].mxu0
        %v362 = vadd.f32 0.0, %v361
        %v363 = vpop.f32.mrb[0].mxu0
        %v364 = vpop.f32.mrb[0].mxu0
        %v365 = vadd.f32 0.0, %v364
        %v366 = vpop.f32.mrb[0].mxu0
        %367 = vmatprep.mubr.bf16.mxu0 0
        %368 = vmatmul.mubr.bf16.gmra.mrb[0].mxu0 %v309
        %v369 = vpop.f32.mrb[0].mxu0
        %v370 = vadd.f32 0.0, %v369
        %v371 = vpop.f32.mrb[0].mxu0
        %v372 = vpop.f32.mrb[0].mxu0
        %v373 = vadd.f32 0.0, %v372
        %v374 = vpop.f32.mrb[0].mxu0
        %375 = vdwg.mxu0
        %v376 = vadd.f32 %v275, %v346
        %v377 = vadd.f32 %v276, %v349
        %v378 = vadd.f32 %v277, %v354
        %v379 = vadd.f32 %v278, %v357
        %v380 = vadd.f32 %v279, %v362
        %v381 = vadd.f32 %v280, %v365
        %v382 = vadd.f32 %v281, %v370
        %v383 = vadd.f32 %v282, %v373
        %384 = vst.msk [vmem:[#allocation3] sm:$0xff] %vm254, %v376
        %385 = vst.msk [vmem:[#allocation3 + $0x8] sm:$0xff] %vm254, %v377
        %386 = vst.msk [vmem:[#allocation3 + $0x10] sm:$0xff] %vm254, %v378
        %387 = vst.msk [vmem:[#allocation3 + $0x18] sm:$0xff] %vm254, %v379
        %388 = vst.msk [vmem:[#allocation3 + $0x20] sm:$0xff] %vm254, %v380
        %389 = vst.msk [vmem:[#allocation3 + $0x28] sm:$0xff] %vm254, %v381
        %390 = vst.msk [vmem:[#allocation3 + $0x30] sm:$0xff] %vm254, %v382
        %391 = vst.msk [vmem:[#allocation3 + $0x38] sm:$0xff] %vm254, %v383
        %v392 = vld [vmem:[#allocation2 + $0x1] sm:$0xff]
        %v393 = vld [vmem:[#allocation2 + $0x11] sm:$0xff]
        %v394 = vld [vmem:[#allocation2 + $0x21] sm:$0xff]
        %v395 = vld [vmem:[#allocation2 + $0x31] sm:$0xff]
        %v396 = vld [vmem:[#allocation2 + $0x41] sm:$0xff]
        %v397 = vld [vmem:[#allocation2 + $0x51] sm:$0xff]
        %v398 = vld [vmem:[#allocation2 + $0x61] sm:$0xff]
        %v399 = vld [vmem:[#allocation2 + $0x71] sm:$0xff]
        %v400 = vpack.c.bf16 %v393, %v392
        %v401 = vpack.c.bf16 %v395, %v394
        %v402 = vpack.c.bf16 %v397, %v396
        %v403 = vpack.c.bf16 %v399, %v398
        %v404 = vld [vmem:[#allocation3] sm:$0xff]
        %v405 = vld [vmem:[#allocation3 + $0x8] sm:$0xff]
        %v406 = vld [vmem:[#allocation3 + $0x10] sm:$0xff]
        %v407 = vld [vmem:[#allocation3 + $0x18] sm:$0xff]
        %v408 = vld [vmem:[#allocation3 + $0x20] sm:$0xff]
        %v409 = vld [vmem:[#allocation3 + $0x28] sm:$0xff]
        %v410 = vld [vmem:[#allocation3 + $0x30] sm:$0xff]
        %v411 = vld [vmem:[#allocation3 + $0x38] sm:$0xff]
        %s412 = scalar_lea.vmem [#allocation6], 16
        %v413 = vld [vmem:[%s412] sm:$0xf]
        %v414 = vld [vmem:[%s412 + $0x4] sm:$0xf]
        %v415 = vld [vmem:[%s412 + $0x8] sm:$0xf]
        %v416 = vld [vmem:[%s412 + $0xc] sm:$0xf]
        %v421 = vunpack.c.l.b16 %v413
        %v422 = vunpack.c.l.b16 %v414
        %v423 = vunpack.c.l.b16 %v415
        %v424 = vunpack.c.l.b16 %v416
        %v425 = vpack.c.b16 %v422, %v421
        %v426 = vpack.c.b16 %v424, %v423
        %v430 = vsel %vm215, %v400, 0
        %v433 = vsel %vm215, %v401, 0
        %v436 = vsel %vm215, %v402, 0
        %v439 = vsel %vm215, %v403, 0
        %441 = vmatprep.subr.bf16.mxu0 0
        %442 = vmatpush1.bf16.msra.mxu0 %v425
        %443 = vmatprep.subr.bf16.mxu0 0
        %444 = vmatpush1.bf16.msra.mxu0 %v426
        %445 = vmatprep.subr.bf16.mxu0 0
        %446 = vmatpush1.bf16.msra.mxu0 0
        %447 = vmatprep.subr.bf16.mxu0 0
        %448 = vmatpush1.bf16.msra.mxu0 0
        %449 = vmatprep.subr.bf16.mxu0 0
        %450 = vmatpush1.bf16.msra.mxu0 0
        %451 = vmatprep.subr.bf16.mxu0 0
        %452 = vmatpush1.bf16.msra.mxu0 0
        %453 = vmatprep.subr.bf16.mxu0 0
        %454 = vmatpush1.bf16.msra.mxu0 0
        %455 = vmatprep.subr.bf16.mxu0 0
        %456 = vmatpush1.bf16.msra.mxu0 0
        %457 = vmatprep.subr.bf16.mxu0 0
        %458 = vmatpush1.bf16.msra.mxu0 0
        %459 = vmatprep.subr.bf16.mxu0 0
        %460 = vmatpush1.bf16.msra.mxu0 0
        %461 = vmatprep.subr.bf16.mxu0 0
        %462 = vmatpush1.bf16.msra.mxu0 0
        %463 = vmatprep.subr.bf16.mxu0 0
        %464 = vmatpush1.bf16.msra.mxu0 0
        %465 = vmatprep.subr.bf16.mxu0 0
        %466 = vmatpush1.bf16.msra.mxu0 0
        %467 = vmatprep.subr.bf16.mxu0 0
        %468 = vmatpush1.bf16.msra.mxu0 0
        %469 = vmatprep.subr.bf16.mxu0 0
        %470 = vmatpush1.bf16.msra.mxu0 0
        %471 = vmatprep.subr.bf16.mxu0 0
        %472 = vmatpush1.bf16.msra.mxu0 0
        %473 = vmatprep.mubr.bf16.mxu0 0
        %474 = vmatmul.mubr.bf16.gmra.mrb[0].mxu0 %v430
        %v475 = vpop.f32.mrb[0].mxu0
        %v476 = vadd.f32 0.0, %v475
        %v477 = vpop.f32.mrb[0].mxu0
        %v478 = vpop.f32.mrb[0].mxu0
        %v479 = vadd.f32 0.0, %v478
        %v480 = vpop.f32.mrb[0].mxu0
        %481 = vmatprep.mubr.bf16.mxu0 0
        %482 = vmatmul.mubr.bf16.gmra.mrb[0].mxu0 %v433
        %v483 = vpop.f32.mrb[0].mxu0
        %v484 = vadd.f32 0.0, %v483
        %v485 = vpop.f32.mrb[0].mxu0
        %v486 = vpop.f32.mrb[0].mxu0
        %v487 = vadd.f32 0.0, %v486
        %v488 = vpop.f32.mrb[0].mxu0
        %489 = vmatprep.mubr.bf16.mxu0 0
        %490 = vmatmul.mubr.bf16.gmra.mrb[0].mxu0 %v436
        %v491 = vpop.f32.mrb[0].mxu0
        %v492 = vadd.f32 0.0, %v491
        %v493 = vpop.f32.mrb[0].mxu0
        %v494 = vpop.f32.mrb[0].mxu0
        %v495 = vadd.f32 0.0, %v494
        %v496 = vpop.f32.mrb[0].mxu0
        %497 = vmatprep.mubr.bf16.mxu0 0
        %498 = vmatmul.mubr.bf16.gmra.mrb[0].mxu0 %v439
        %v499 = vpop.f32.mrb[0].mxu0
        %v500 = vadd.f32 0.0, %v499
        %v501 = vpop.f32.mrb[0].mxu0
        %v502 = vpop.f32.mrb[0].mxu0
        %v503 = vadd.f32 0.0, %v502
        %v504 = vpop.f32.mrb[0].mxu0
        %505 = vdwg.mxu0
        %v506 = vadd.f32 %v404, %v476
        %v507 = vadd.f32 %v405, %v479
        %v508 = vadd.f32 %v406, %v484
        %v509 = vadd.f32 %v407, %v487
        %v510 = vadd.f32 %v408, %v492
        %v511 = vadd.f32 %v409, %v495
        %v512 = vadd.f32 %v410, %v500
        %v513 = vadd.f32 %v411, %v503
        %514 = vst.msk [vmem:[#allocation3] sm:$0xff] %vm254, %v506
        %515 = vst.msk [vmem:[#allocation3 + $0x8] sm:$0xff] %vm254, %v507
        %516 = vst.msk [vmem:[#allocation3 + $0x10] sm:$0xff] %vm254, %v508
        %517 = vst.msk [vmem:[#allocation3 + $0x18] sm:$0xff] %vm254, %v509
        %518 = vst.msk [vmem:[#allocation3 + $0x20] sm:$0xff] %vm254, %v510
        %519 = vst.msk [vmem:[#allocation3 + $0x28] sm:$0xff] %vm254, %v511
        %520 = vst.msk [vmem:[#allocation3 + $0x30] sm:$0xff] %vm254, %v512
        %521 = vst.msk [vmem:[#allocation3 + $0x38] sm:$0xff] %vm254, %v513
        %v522 = vld [vmem:[#allocation2 + $0x2] sm:$0xff]
        %v523 = vld [vmem:[#allocation2 + $0x12] sm:$0xff]
        %v524 = vld [vmem:[#allocation2 + $0x22] sm:$0xff]
        %v525 = vld [vmem:[#allocation2 + $0x32] sm:$0xff]
        %v526 = vld [vmem:[#allocation2 + $0x42] sm:$0xff]
        %v527 = vld [vmem:[#allocation2 + $0x52] sm:$0xff]
        %v528 = vld [vmem:[#allocation2 + $0x62] sm:$0xff]
        %v529 = vld [vmem:[#allocation2 + $0x72] sm:$0xff]
        %v530 = vpack.c.bf16 %v523, %v522
        %v531 = vpack.c.bf16 %v525, %v524
        %v532 = vpack.c.bf16 %v527, %v526
        %v533 = vpack.c.bf16 %v529, %v528
        %v534 = vld [vmem:[#allocation3] sm:$0xff]
        %v535 = vld [vmem:[#allocation3 + $0x8] sm:$0xff]
        %v536 = vld [vmem:[#allocation3 + $0x10] sm:$0xff]
        %v537 = vld [vmem:[#allocation3 + $0x18] sm:$0xff]
        %v538 = vld [vmem:[#allocation3 + $0x20] sm:$0xff]
        %v539 = vld [vmem:[#allocation3 + $0x28] sm:$0xff]
        %v540 = vld [vmem:[#allocation3 + $0x30] sm:$0xff]
        %v541 = vld [vmem:[#allocation3 + $0x38] sm:$0xff]
        %s542 = scalar_lea.vmem [#allocation6], 32
        %v543 = vld [vmem:[%s542] sm:$0xf]
        %v544 = vld [vmem:[%s542 + $0x4] sm:$0xf]
        %v545 = vld [vmem:[%s542 + $0x8] sm:$0xf]
        %v546 = vld [vmem:[%s542 + $0xc] sm:$0xf]
        %v551 = vunpack.c.l.b16 %v543
        %v552 = vunpack.c.l.b16 %v544
        %v553 = vunpack.c.l.b16 %v545
        %v554 = vunpack.c.l.b16 %v546
        %v555 = vpack.c.b16 %v552, %v551
        %v556 = vpack.c.b16 %v554, %v553
        %v560 = vsel %vm215, %v530, 0
        %v563 = vsel %vm215, %v531, 0
        %v566 = vsel %vm215, %v532, 0
        %v569 = vsel %vm215, %v533, 0
        %571 = vmatprep.subr.bf16.mxu0 0
        %572 = vmatpush1.bf16.msra.mxu0 %v555
        %573 = vmatprep.subr.bf16.mxu0 0
        %574 = vmatpush1.bf16.msra.mxu0 %v556
        %575 = vmatprep.subr.bf16.mxu0 0
        %576 = vmatpush1.bf16.msra.mxu0 0
        %577 = vmatprep.subr.bf16.mxu0 0
        %578 = vmatpush1.bf16.msra.mxu0 0
        %579 = vmatprep.subr.bf16.mxu0 0
        %580 = vmatpush1.bf16.msra.mxu0 0
        %581 = vmatprep.subr.bf16.mxu0 0
        %582 = vmatpush1.bf16.msra.mxu0 0
        %583 = vmatprep.subr.bf16.mxu0 0
        %584 = vmatpush1.bf16.msra.mxu0 0
        %585 = vmatprep.subr.bf16.mxu0 0
        %586 = vmatpush1.bf16.msra.mxu0 0
        %587 = vmatprep.subr.bf16.mxu0 0
        %588 = vmatpush1.bf16.msra.mxu0 0
        %589 = vmatprep.subr.bf16.mxu0 0
        %590 = vmatpush1.bf16.msra.mxu0 0
        %591 = vmatprep.subr.bf16.mxu0 0
        %592 = vmatpush1.bf16.msra.mxu0 0
        %593 = vmatprep.subr.bf16.mxu0 0
        %594 = vmatpush1.bf16.msra.mxu0 0
        %595 = vmatprep.subr.bf16.mxu0 0
        %596 = vmatpush1.bf16.msra.mxu0 0
        %597 = vmatprep.subr.bf16.mxu0 0
        %598 = vmatpush1.bf16.msra.mxu0 0
        %599 = vmatprep.subr.bf16.mxu0 0
        %600 = vmatpush1.bf16.msra.mxu0 0
        %601 = vmatprep.subr.bf16.mxu0 0
        %602 = vmatpush1.bf16.msra.mxu0 0
        %603 = vmatprep.mubr.bf16.mxu0 0
        %604 = vmatmul.mubr.bf16.gmra.mrb[0].mxu0 %v560
        %v605 = vpop.f32.mrb[0].mxu0
        %v606 = vadd.f32 0.0, %v605
        %v607 = vpop.f32.mrb[0].mxu0
        %v608 = vpop.f32.mrb[0].mxu0
        %v609 = vadd.f32 0.0, %v608
        %v610 = vpop.f32.mrb[0].mxu0
        %611 = vmatprep.mubr.bf16.mxu0 0
        %612 = vmatmul.mubr.bf16.gmra.mrb[0].mxu0 %v563
        %v613 = vpop.f32.mrb[0].mxu0
        %v614 = vadd.f32 0.0, %v613
        %v615 = vpop.f32.mrb[0].mxu0
        %v616 = vpop.f32.mrb[0].mxu0
        %v617 = vadd.f32 0.0, %v616
        %v618 = vpop.f32.mrb[0].mxu0
        %619 = vmatprep.mubr.bf16.mxu0 0
        %620 = vmatmul.mubr.bf16.gmra.mrb[0].mxu0 %v566
        %v621 = vpop.f32.mrb[0].mxu0
        %v622 = vadd.f32 0.0, %v621
        %v623 = vpop.f32.mrb[0].mxu0
        %v624 = vpop.f32.mrb[0].mxu0
        %v625 = vadd.f32 0.0, %v624
        %v626 = vpop.f32.mrb[0].mxu0
        %627 = vmatprep.mubr.bf16.mxu0 0
        %628 = vmatmul.mubr.bf16.gmra.mrb[0].mxu0 %v569
        %v629 = vpop.f32.mrb[0].mxu0
        %v630 = vadd.f32 0.0, %v629
        %v631 = vpop.f32.mrb[0].mxu0
        %v632 = vpop.f32.mrb[0].mxu0
        %v633 = vadd.f32 0.0, %v632
        %v634 = vpop.f32.mrb[0].mxu0
        %635 = vdwg.mxu0
        %v636 = vadd.f32 %v534, %v606
        %v637 = vadd.f32 %v535, %v609
        %v638 = vadd.f32 %v536, %v614
        %v639 = vadd.f32 %v537, %v617
        %v640 = vadd.f32 %v538, %v622
        %v641 = vadd.f32 %v539, %v625
        %v642 = vadd.f32 %v540, %v630
        %v643 = vadd.f32 %v541, %v633
        %644 = vst.msk [vmem:[#allocation3] sm:$0xff] %vm254, %v636
        %645 = vst.msk [vmem:[#allocation3 + $0x8] sm:$0xff] %vm254, %v637
        %646 = vst.msk [vmem:[#allocation3 + $0x10] sm:$0xff] %vm254, %v638
        %647 = vst.msk [vmem:[#allocation3 + $0x18] sm:$0xff] %vm254, %v639
        %648 = vst.msk [vmem:[#allocation3 + $0x20] sm:$0xff] %vm254, %v640
        %649 = vst.msk [vmem:[#allocation3 + $0x28] sm:$0xff] %vm254, %v641
        %650 = vst.msk [vmem:[#allocation3 + $0x30] sm:$0xff] %vm254, %v642
        %651 = vst.msk [vmem:[#allocation3 + $0x38] sm:$0xff] %vm254, %v643
        %v652 = vld [vmem:[%s245] sm:$0xff]
        %v653 = vld [vmem:[%s245 + $0x10] sm:$0xff]
        %v654 = vld [vmem:[%s245 + $0x20] sm:$0xff]
        %v655 = vld [vmem:[%s245 + $0x30] sm:$0xff]
        %v656 = vld [vmem:[%s245 + $0x40] sm:$0xff]
        %v657 = vld [vmem:[%s245 + $0x50] sm:$0xff]
        %v658 = vld [vmem:[%s245 + $0x60] sm:$0xff]
        %v659 = vld [vmem:[%s245 + $0x70] sm:$0xff]
        %v660 = vpack.c.bf16 %v653, %v652
        %v661 = vpack.c.bf16 %v655, %v654
        %v662 = vpack.c.bf16 %v657, %v656
        %v663 = vpack.c.bf16 %v659, %v658
        %v664 = vld [vmem:[#allocation3] sm:$0xff]
        %v665 = vld [vmem:[#allocation3 + $0x8] sm:$0xff]
        %v666 = vld [vmem:[#allocation3 + $0x10] sm:$0xff]
        %v667 = vld [vmem:[#allocation3 + $0x18] sm:$0xff]
        %v668 = vld [vmem:[#allocation3 + $0x20] sm:$0xff]
        %v669 = vld [vmem:[#allocation3 + $0x28] sm:$0xff]
        %v670 = vld [vmem:[#allocation3 + $0x30] sm:$0xff]
        %v671 = vld [vmem:[#allocation3 + $0x38] sm:$0xff]
        %s672 = scalar_lea.vmem [#allocation6], 48
        %v673 = vld [vmem:[%s672] sm:$0xf]
        %v674 = vld [vmem:[%s672 + $0x4] sm:$0xf]
        %v675 = vld [vmem:[%s672 + $0x8] sm:$0xf]
        %v676 = vld [vmem:[%s672 + $0xc] sm:$0xf]
        %v681 = vunpack.c.l.b16 %v673
        %v682 = vunpack.c.l.b16 %v674
        %v683 = vunpack.c.l.b16 %v675
        %v684 = vunpack.c.l.b16 %v676
        %v685 = vpack.c.b16 %v682, %v681
        %v686 = vpack.c.b16 %v684, %v683
        %v690 = vsel %vm215, %v660, 0
        %v693 = vsel %vm215, %v661, 0
        %v696 = vsel %vm215, %v662, 0
        %v699 = vsel %vm215, %v663, 0
        %701 = vmatprep.subr.bf16.mxu0 0
        %702 = vmatpush1.bf16.msra.mxu0 %v685
        %703 = vmatprep.subr.bf16.mxu0 0
        %704 = vmatpush1.bf16.msra.mxu0 %v686
        %705 = vmatprep.subr.bf16.mxu0 0
        %706 = vmatpush1.bf16.msra.mxu0 0
        %707 = vmatprep.subr.bf16.mxu0 0
        %708 = vmatpush1.bf16.msra.mxu0 0
        %709 = vmatprep.subr.bf16.mxu0 0
        %710 = vmatpush1.bf16.msra.mxu0 0
        %711 = vmatprep.subr.bf16.mxu0 0
        %712 = vmatpush1.bf16.msra.mxu0 0
        %713 = vmatprep.subr.bf16.mxu0 0
        %714 = vmatpush1.bf16.msra.mxu0 0
        %715 = vmatprep.subr.bf16.mxu0 0
        %716 = vmatpush1.bf16.msra.mxu0 0
        %717 = vmatprep.subr.bf16.mxu0 0
        %718 = vmatpush1.bf16.msra.mxu0 0
        %719 = vmatprep.subr.bf16.mxu0 0
        %720 = vmatpush1.bf16.msra.mxu0 0
        %721 = vmatprep.subr.bf16.mxu0 0
        %722 = vmatpush1.bf16.msra.mxu0 0
        %723 = vmatprep.subr.bf16.mxu0 0
        %724 = vmatpush1.bf16.msra.mxu0 0
        %725 = vmatprep.subr.bf16.mxu0 0
        %726 = vmatpush1.bf16.msra.mxu0 0
        %727 = vmatprep.subr.bf16.mxu0 0
        %728 = vmatpush1.bf16.msra.mxu0 0
        %729 = vmatprep.subr.bf16.mxu0 0
        %730 = vmatpush1.bf16.msra.mxu0 0
        %731 = vmatprep.subr.bf16.mxu0 0
        %732 = vmatpush1.bf16.msra.mxu0 0
        %733 = vmatprep.mubr.bf16.mxu0 0
        %734 = vmatmul.mubr.bf16.gmra.mrb[0].mxu0 %v690
        %v735 = vpop.f32.mrb[0].mxu0
        %v736 = vadd.f32 0.0, %v735
        %v737 = vpop.f32.mrb[0].mxu0
        %v738 = vpop.f32.mrb[0].mxu0
        %v739 = vadd.f32 0.0, %v738
        %v740 = vpop.f32.mrb[0].mxu0
        %741 = vmatprep.mubr.bf16.mxu0 0
        %742 = vmatmul.mubr.bf16.gmra.mrb[0].mxu0 %v693
        %v743 = vpop.f32.mrb[0].mxu0
        %v744 = vadd.f32 0.0, %v743
        %v745 = vpop.f32.mrb[0].mxu0
        %v746 = vpop.f32.mrb[0].mxu0
        %v747 = vadd.f32 0.0, %v746
        %v748 = vpop.f32.mrb[0].mxu0
        %749 = vmatprep.mubr.bf16.mxu0 0
        %750 = vmatmul.mubr.bf16.gmra.mrb[0].mxu0 %v696
        %v751 = vpop.f32.mrb[0].mxu0
        %v752 = vadd.f32 0.0, %v751
        %v753 = vpop.f32.mrb[0].mxu0
        %v754 = vpop.f32.mrb[0].mxu0
        %v755 = vadd.f32 0.0, %v754
        %v756 = vpop.f32.mrb[0].mxu0
        %757 = vmatprep.mubr.bf16.mxu0 0
        %758 = vmatmul.mubr.bf16.gmra.mrb[0].mxu0 %v699
        %v759 = vpop.f32.mrb[0].mxu0
        %v760 = vadd.f32 0.0, %v759
        %v761 = vpop.f32.mrb[0].mxu0
        %v762 = vpop.f32.mrb[0].mxu0
        %v763 = vadd.f32 0.0, %v762
        %v764 = vpop.f32.mrb[0].mxu0
        %765 = vdwg.mxu0
        %v766 = vadd.f32 %v664, %v736
        %v767 = vadd.f32 %v665, %v739
        %v768 = vadd.f32 %v666, %v744
        %v769 = vadd.f32 %v667, %v747
        %v770 = vadd.f32 %v668, %v752
        %v771 = vadd.f32 %v669, %v755
        %v772 = vadd.f32 %v670, %v760
        %v773 = vadd.f32 %v671, %v763
        %774 = vst.msk [vmem:[#allocation3] sm:$0xff] %vm254, %v766
        %775 = vst.msk [vmem:[#allocation3 + $0x8] sm:$0xff] %vm254, %v767
        %776 = vst.msk [vmem:[#allocation3 + $0x10] sm:$0xff] %vm254, %v768
        %777 = vst.msk [vmem:[#allocation3 + $0x18] sm:$0xff] %vm254, %v769
        %778 = vst.msk [vmem:[#allocation3 + $0x20] sm:$0xff] %vm254, %v770
        %779 = vst.msk [vmem:[#allocation3 + $0x28] sm:$0xff] %vm254, %v771
        %780 = vst.msk [vmem:[#allocation3 + $0x30] sm:$0xff] %vm254, %v772
        %781 = vst.msk [vmem:[#allocation3 + $0x38] sm:$0xff] %vm254, %v773
        %v782 = vld [vmem:[%s245 + $0x1] sm:$0xff]
        %v783 = vld [vmem:[%s245 + $0x11] sm:$0xff]
        %v784 = vld [vmem:[%s245 + $0x21] sm:$0xff]
        %v785 = vld [vmem:[%s245 + $0x31] sm:$0xff]
        %v786 = vld [vmem:[%s245 + $0x41] sm:$0xff]
        %v787 = vld [vmem:[%s245 + $0x51] sm:$0xff]
        %v788 = vld [vmem:[%s245 + $0x61] sm:$0xff]
        %v789 = vld [vmem:[%s245 + $0x71] sm:$0xff]
        %v790 = vpack.c.bf16 %v783, %v782
        %v791 = vpack.c.bf16 %v785, %v784
        %v792 = vpack.c.bf16 %v787, %v786
        %v793 = vpack.c.bf16 %v789, %v788
        %v794 = vld [vmem:[#allocation3] sm:$0xff]
        %v795 = vld [vmem:[#allocation3 + $0x8] sm:$0xff]
        %v796 = vld [vmem:[#allocation3 + $0x10] sm:$0xff]
        %v797 = vld [vmem:[#allocation3 + $0x18] sm:$0xff]
        %v798 = vld [vmem:[#allocation3 + $0x20] sm:$0xff]
        %v799 = vld [vmem:[#allocation3 + $0x28] sm:$0xff]
        %v800 = vld [vmem:[#allocation3 + $0x30] sm:$0xff]
        %v801 = vld [vmem:[#allocation3 + $0x38] sm:$0xff]
        %s802 = scalar_lea.vmem [#allocation6], 64
        %v803 = vld [vmem:[%s802] sm:$0xf]
        %v804 = vld [vmem:[%s802 + $0x4] sm:$0xf]
        %v805 = vld [vmem:[%s802 + $0x8] sm:$0xf]
        %v806 = vld [vmem:[%s802 + $0xc] sm:$0xf]
        %v811 = vunpack.c.l.b16 %v803
        %v812 = vunpack.c.l.b16 %v804
        %v813 = vunpack.c.l.b16 %v805
        %v814 = vunpack.c.l.b16 %v806
        %v815 = vpack.c.b16 %v812, %v811
        %v816 = vpack.c.b16 %v814, %v813
        %v820 = vsel %vm215, %v790, 0
        %v823 = vsel %vm215, %v791, 0
        %v826 = vsel %vm215, %v792, 0
        %v829 = vsel %vm215, %v793, 0
        %831 = vmatprep.subr.bf16.mxu0 0
        %832 = vmatpush1.bf16.msra.mxu0 %v815
        %833 = vmatprep.subr.bf16.mxu0 0
        %834 = vmatpush1.bf16.msra.mxu0 %v816
        %835 = vmatprep.subr.bf16.mxu0 0
        %836 = vmatpush1.bf16.msra.mxu0 0
        %837 = vmatprep.subr.bf16.mxu0 0
        %838 = vmatpush1.bf16.msra.mxu0 0
        %839 = vmatprep.subr.bf16.mxu0 0
        %840 = vmatpush1.bf16.msra.mxu0 0
        %841 = vmatprep.subr.bf16.mxu0 0
        %842 = vmatpush1.bf16.msra.mxu0 0
        %843 = vmatprep.subr.bf16.mxu0 0
        %844 = vmatpush1.bf16.msra.mxu0 0
        %845 = vmatprep.subr.bf16.mxu0 0
        %846 = vmatpush1.bf16.msra.mxu0 0
        %847 = vmatprep.subr.bf16.mxu0 0
        %848 = vmatpush1.bf16.msra.mxu0 0
        %849 = vmatprep.subr.bf16.mxu0 0
        %850 = vmatpush1.bf16.msra.mxu0 0
        %851 = vmatprep.subr.bf16.mxu0 0
        %852 = vmatpush1.bf16.msra.mxu0 0
        %853 = vmatprep.subr.bf16.mxu0 0
        %854 = vmatpush1.bf16.msra.mxu0 0
        %855 = vmatprep.subr.bf16.mxu0 0
        %856 = vmatpush1.bf16.msra.mxu0 0
        %857 = vmatprep.subr.bf16.mxu0 0
        %858 = vmatpush1.bf16.msra.mxu0 0
        %859 = vmatprep.subr.bf16.mxu0 0
        %860 = vmatpush1.bf16.msra.mxu0 0
        %861 = vmatprep.subr.bf16.mxu0 0
        %862 = vmatpush1.bf16.msra.mxu0 0
        %863 = vmatprep.mubr.bf16.mxu0 0
        %864 = vmatmul.mubr.bf16.gmra.mrb[0].mxu0 %v820
        %v865 = vpop.f32.mrb[0].mxu0
        %v866 = vadd.f32 0.0, %v865
        %v867 = vpop.f32.mrb[0].mxu0
        %v868 = vpop.f32.mrb[0].mxu0
        %v869 = vadd.f32 0.0, %v868
        %v870 = vpop.f32.mrb[0].mxu0
        %871 = vmatprep.mubr.bf16.mxu0 0
        %872 = vmatmul.mubr.bf16.gmra.mrb[0].mxu0 %v823
        %v873 = vpop.f32.mrb[0].mxu0
        %v874 = vadd.f32 0.0, %v873
        %v875 = vpop.f32.mrb[0].mxu0
        %v876 = vpop.f32.mrb[0].mxu0
        %v877 = vadd.f32 0.0, %v876
        %v878 = vpop.f32.mrb[0].mxu0
        %879 = vmatprep.mubr.bf16.mxu0 0
        %880 = vmatmul.mubr.bf16.gmra.mrb[0].mxu0 %v826
        %v881 = vpop.f32.mrb[0].mxu0
        %v882 = vadd.f32 0.0, %v881
        %v883 = vpop.f32.mrb[0].mxu0
        %v884 = vpop.f32.mrb[0].mxu0
        %v885 = vadd.f32 0.0, %v884
        %v886 = vpop.f32.mrb[0].mxu0
        %887 = vmatprep.mubr.bf16.mxu0 0
        %888 = vmatmul.mubr.bf16.gmra.mrb[0].mxu0 %v829
        %v889 = vpop.f32.mrb[0].mxu0
        %v890 = vadd.f32 0.0, %v889
        %v891 = vpop.f32.mrb[0].mxu0
        %v892 = vpop.f32.mrb[0].mxu0
        %v893 = vadd.f32 0.0, %v892
        %v894 = vpop.f32.mrb[0].mxu0
        %895 = vdwg.mxu0
        %v896 = vadd.f32 %v794, %v866
        %v897 = vadd.f32 %v795, %v869
        %v898 = vadd.f32 %v796, %v874
        %v899 = vadd.f32 %v797, %v877
        %v900 = vadd.f32 %v798, %v882
        %v901 = vadd.f32 %v799, %v885
        %v902 = vadd.f32 %v800, %v890
        %v903 = vadd.f32 %v801, %v893
        %904 = vst.msk [vmem:[#allocation3] sm:$0xff] %vm254, %v896
        %905 = vst.msk [vmem:[#allocation3 + $0x8] sm:$0xff] %vm254, %v897
        %906 = vst.msk [vmem:[#allocation3 + $0x10] sm:$0xff] %vm254, %v898
        %907 = vst.msk [vmem:[#allocation3 + $0x18] sm:$0xff] %vm254, %v899
        %908 = vst.msk [vmem:[#allocation3 + $0x20] sm:$0xff] %vm254, %v900
        %909 = vst.msk [vmem:[#allocation3 + $0x28] sm:$0xff] %vm254, %v901
        %910 = vst.msk [vmem:[#allocation3 + $0x30] sm:$0xff] %vm254, %v902
        %911 = vst.msk [vmem:[#allocation3 + $0x38] sm:$0xff] %vm254, %v903
        %v912 = vld [vmem:[%s245 + $0x2] sm:$0xff]
        %v913 = vld [vmem:[%s245 + $0x12] sm:$0xff]
        %v914 = vld [vmem:[%s245 + $0x22] sm:$0xff]
        %v915 = vld [vmem:[%s245 + $0x32] sm:$0xff]
        %v916 = vld [vmem:[%s245 + $0x42] sm:$0xff]
        %v917 = vld [vmem:[%s245 + $0x52] sm:$0xff]
        %v918 = vld [vmem:[%s245 + $0x62] sm:$0xff]
        %v919 = vld [vmem:[%s245 + $0x72] sm:$0xff]
        %v920 = vpack.c.bf16 %v913, %v912
        %v921 = vpack.c.bf16 %v915, %v914
        %v922 = vpack.c.bf16 %v917, %v916
        %v923 = vpack.c.bf16 %v919, %v918
        %v924 = vld [vmem:[#allocation3] sm:$0xff]
        %v925 = vld [vmem:[#allocation3 + $0x8] sm:$0xff]
        %v926 = vld [vmem:[#allocation3 + $0x10] sm:$0xff]
        %v927 = vld [vmem:[#allocation3 + $0x18] sm:$0xff]
        %v928 = vld [vmem:[#allocation3 + $0x20] sm:$0xff]
        %v929 = vld [vmem:[#allocation3 + $0x28] sm:$0xff]
        %v930 = vld [vmem:[#allocation3 + $0x30] sm:$0xff]
        %v931 = vld [vmem:[#allocation3 + $0x38] sm:$0xff]
        %s932 = scalar_lea.vmem [#allocation6], 80
        %v933 = vld [vmem:[%s932] sm:$0xf]
        %v934 = vld [vmem:[%s932 + $0x4] sm:$0xf]
        %v935 = vld [vmem:[%s932 + $0x8] sm:$0xf]
        %v936 = vld [vmem:[%s932 + $0xc] sm:$0xf]
        %v941 = vunpack.c.l.b16 %v933
        %v942 = vunpack.c.l.b16 %v934
        %v943 = vunpack.c.l.b16 %v935
        %v944 = vunpack.c.l.b16 %v936
        %v945 = vpack.c.b16 %v942, %v941
        %v946 = vpack.c.b16 %v944, %v943
        %v950 = vsel %vm215, %v920, 0
        %v953 = vsel %vm215, %v921, 0
        %v956 = vsel %vm215, %v922, 0
        %v959 = vsel %vm215, %v923, 0
        %961 = vmatprep.subr.bf16.mxu0 0
        %962 = vmatpush1.bf16.msra.mxu0 %v945
        %963 = vmatprep.subr.bf16.mxu0 0
        %964 = vmatpush1.bf16.msra.mxu0 %v946
        %965 = vmatprep.subr.bf16.mxu0 0
        %966 = vmatpush1.bf16.msra.mxu0 0
        %967 = vmatprep.subr.bf16.mxu0 0
        %968 = vmatpush1.bf16.msra.mxu0 0
        %969 = vmatprep.subr.bf16.mxu0 0
        %970 = vmatpush1.bf16.msra.mxu0 0
        %971 = vmatprep.subr.bf16.mxu0 0
        %972 = vmatpush1.bf16.msra.mxu0 0
        %973 = vmatprep.subr.bf16.mxu0 0
        %974 = vmatpush1.bf16.msra.mxu0 0
        %975 = vmatprep.subr.bf16.mxu0 0
        %976 = vmatpush1.bf16.msra.mxu0 0
        %977 = vmatprep.subr.bf16.mxu0 0
        %978 = vmatpush1.bf16.msra.mxu0 0
        %979 = vmatprep.subr.bf16.mxu0 0
        %980 = vmatpush1.bf16.msra.mxu0 0
        %981 = vmatprep.subr.bf16.mxu0 0
        %982 = vmatpush1.bf16.msra.mxu0 0
        %983 = vmatprep.subr.bf16.mxu0 0
        %984 = vmatpush1.bf16.msra.mxu0 0
        %985 = vmatprep.subr.bf16.mxu0 0
        %986 = vmatpush1.bf16.msra.mxu0 0
        %987 = vmatprep.subr.bf16.mxu0 0
        %988 = vmatpush1.bf16.msra.mxu0 0
        %989 = vmatprep.subr.bf16.mxu0 0
        %990 = vmatpush1.bf16.msra.mxu0 0
        %991 = vmatprep.subr.bf16.mxu0 0
        %992 = vmatpush1.bf16.msra.mxu0 0
        %993 = vmatprep.mubr.bf16.mxu0 0
        %994 = vmatmul.mubr.bf16.gmra.mrb[0].mxu0 %v950
        %v995 = vpop.f32.mrb[0].mxu0
        %v996 = vadd.f32 0.0, %v995
        %v997 = vpop.f32.mrb[0].mxu0
        %v998 = vpop.f32.mrb[0].mxu0
        %v999 = vadd.f32 0.0, %v998
        %v1000 = vpop.f32.mrb[0].mxu0
        %1001 = vmatprep.mubr.bf16.mxu0 0
        %1002 = vmatmul.mubr.bf16.gmra.mrb[0].mxu0 %v953
        %v1003 = vpop.f32.mrb[0].mxu0
        %v1004 = vadd.f32 0.0, %v1003
        %v1005 = vpop.f32.mrb[0].mxu0
        %v1006 = vpop.f32.mrb[0].mxu0
        %v1007 = vadd.f32 0.0, %v1006
        %v1008 = vpop.f32.mrb[0].mxu0
        %1009 = vmatprep.mubr.bf16.mxu0 0
        %1010 = vmatmul.mubr.bf16.gmra.mrb[0].mxu0 %v956
        %v1011 = vpop.f32.mrb[0].mxu0
        %v1012 = vadd.f32 0.0, %v1011
        %v1013 = vpop.f32.mrb[0].mxu0
        %v1014 = vpop.f32.mrb[0].mxu0
        %v1015 = vadd.f32 0.0, %v1014
        %v1016 = vpop.f32.mrb[0].mxu0
        %1017 = vmatprep.mubr.bf16.mxu0 0
        %1018 = vmatmul.mubr.bf16.gmra.mrb[0].mxu0 %v959
        %v1019 = vpop.f32.mrb[0].mxu0
        %v1020 = vadd.f32 0.0, %v1019
        %v1021 = vpop.f32.mrb[0].mxu0
        %v1022 = vpop.f32.mrb[0].mxu0
        %v1023 = vadd.f32 0.0, %v1022
        %v1024 = vpop.f32.mrb[0].mxu0
        %1025 = vdwg.mxu0
        %v1026 = vadd.f32 %v924, %v996
        %v1027 = vadd.f32 %v925, %v999
        %v1028 = vadd.f32 %v926, %v1004
        %v1029 = vadd.f32 %v927, %v1007
        %v1030 = vadd.f32 %v928, %v1012
        %v1031 = vadd.f32 %v929, %v1015
        %v1032 = vadd.f32 %v930, %v1020
        %v1033 = vadd.f32 %v931, %v1023
        %1034 = vst.msk [vmem:[#allocation3] sm:$0xff] %vm254, %v1026
        %1035 = vst.msk [vmem:[#allocation3 + $0x8] sm:$0xff] %vm254, %v1027
        %1036 = vst.msk [vmem:[#allocation3 + $0x10] sm:$0xff] %vm254, %v1028
        %1037 = vst.msk [vmem:[#allocation3 + $0x18] sm:$0xff] %vm254, %v1029
        %1038 = vst.msk [vmem:[#allocation3 + $0x20] sm:$0xff] %vm254, %v1030
        %1039 = vst.msk [vmem:[#allocation3 + $0x28] sm:$0xff] %vm254, %v1031
        %1040 = vst.msk [vmem:[#allocation3 + $0x30] sm:$0xff] %vm254, %v1032
        %1041 = vst.msk [vmem:[#allocation3 + $0x38] sm:$0xff] %vm254, %v1033
        %s1042 = scalar_lea.vmem [#allocation2], 32
        %v1043 = vld [vmem:[%s1042] sm:$0xff]
        %v1044 = vld [vmem:[%s1042 + $0x10] sm:$0xff]
        %v1045 = vld [vmem:[%s1042 + $0x20] sm:$0xff]
        %v1046 = vld [vmem:[%s1042 + $0x30] sm:$0xff]
        %v1047 = vld [vmem:[%s1042 + $0x40] sm:$0xff]
        %v1048 = vld [vmem:[%s1042 + $0x50] sm:$0xff]
        %v1049 = vld [vmem:[%s1042 + $0x60] sm:$0xff]
        %v1050 = vld [vmem:[%s1042 + $0x70] sm:$0xff]
        %v1051 = vpack.c.bf16 %v1044, %v1043
        %v1052 = vpack.c.bf16 %v1046, %v1045
        %v1053 = vpack.c.bf16 %v1048, %v1047
        %v1054 = vpack.c.bf16 %v1050, %v1049
        %v1055 = vld [vmem:[#allocation3] sm:$0xff]
        %v1056 = vld [vmem:[#allocation3 + $0x8] sm:$0xff]
        %v1057 = vld [vmem:[#allocation3 + $0x10] sm:$0xff]
        %v1058 = vld [vmem:[#allocation3 + $0x18] sm:$0xff]
        %v1059 = vld [vmem:[#allocation3 + $0x20] sm:$0xff]
        %v1060 = vld [vmem:[#allocation3 + $0x28] sm:$0xff]
        %v1061 = vld [vmem:[#allocation3 + $0x30] sm:$0xff]
        %v1062 = vld [vmem:[#allocation3 + $0x38] sm:$0xff]
        %s1063 = scalar_lea.vmem [#allocation6], 96
        %v1064 = vld [vmem:[%s1063] sm:$0xf]
        %v1065 = vld [vmem:[%s1063 + $0x4] sm:$0xf]
        %v1066 = vld [vmem:[%s1063 + $0x8] sm:$0xf]
        %v1067 = vld [vmem:[%s1063 + $0xc] sm:$0xf]
        %v1072 = vunpack.c.l.b16 %v1064
        %v1073 = vunpack.c.l.b16 %v1065
        %v1074 = vunpack.c.l.b16 %v1066
        %v1075 = vunpack.c.l.b16 %v1067
        %v1076 = vpack.c.b16 %v1073, %v1072
        %v1077 = vpack.c.b16 %v1075, %v1074
        %v1081 = vsel %vm215, %v1051, 0
        %v1084 = vsel %vm215, %v1052, 0
        %v1087 = vsel %vm215, %v1053, 0
        %v1090 = vsel %vm215, %v1054, 0
        %1092 = vmatprep.subr.bf16.mxu0 0
        %1093 = vmatpush1.bf16.msra.mxu0 %v1076
        %1094 = vmatprep.subr.bf16.mxu0 0
        %1095 = vmatpush1.bf16.msra.mxu0 %v1077
        %1096 = vmatprep.subr.bf16.mxu0 0
        %1097 = vmatpush1.bf16.msra.mxu0 0
        %1098 = vmatprep.subr.bf16.mxu0 0
        %1099 = vmatpush1.bf16.msra.mxu0 0
        %1100 = vmatprep.subr.bf16.mxu0 0
        %1101 = vmatpush1.bf16.msra.mxu0 0
        %1102 = vmatprep.subr.bf16.mxu0 0
        %1103 = vmatpush1.bf16.msra.mxu0 0
        %1104 = vmatprep.subr.bf16.mxu0 0
        %1105 = vmatpush1.bf16.msra.mxu0 0
        %1106 = vmatprep.subr.bf16.mxu0 0
        %1107 = vmatpush1.bf16.msra.mxu0 0
        %1108 = vmatprep.subr.bf16.mxu0 0
        %1109 = vmatpush1.bf16.msra.mxu0 0
        %1110 = vmatprep.subr.bf16.mxu0 0
        %1111 = vmatpush1.bf16.msra.mxu0 0
        %1112 = vmatprep.subr.bf16.mxu0 0
        %1113 = vmatpush1.bf16.msra.mxu0 0
        %1114 = vmatprep.subr.bf16.mxu0 0
        %1115 = vmatpush1.bf16.msra.mxu0 0
        %1116 = vmatprep.subr.bf16.mxu0 0
        %1117 = vmatpush1.bf16.msra.mxu0 0
        %1118 = vmatprep.subr.bf16.mxu0 0
        %1119 = vmatpush1.bf16.msra.mxu0 0
        %1120 = vmatprep.subr.bf16.mxu0 0
        %1121 = vmatpush1.bf16.msra.mxu0 0
        %1122 = vmatprep.subr.bf16.mxu0 0
        %1123 = vmatpush1.bf16.msra.mxu0 0
        %1124 = vmatprep.mubr.bf16.mxu0 0
        %1125 = vmatmul.mubr.bf16.gmra.mrb[0].mxu0 %v1081
        %v1126 = vpop.f32.mrb[0].mxu0
        %v1127 = vadd.f32 0.0, %v1126
        %v1128 = vpop.f32.mrb[0].mxu0
        %v1129 = vpop.f32.mrb[0].mxu0
        %v1130 = vadd.f32 0.0, %v1129
        %v1131 = vpop.f32.mrb[0].mxu0
        %1132 = vmatprep.mubr.bf16.mxu0 0
        %1133 = vmatmul.mubr.bf16.gmra.mrb[0].mxu0 %v1084
        %v1134 = vpop.f32.mrb[0].mxu0
        %v1135 = vadd.f32 0.0, %v1134
        %v1136 = vpop.f32.mrb[0].mxu0
        %v1137 = vpop.f32.mrb[0].mxu0
        %v1138 = vadd.f32 0.0, %v1137
        %v1139 = vpop.f32.mrb[0].mxu0
        %1140 = vmatprep.mubr.bf16.mxu0 0
        %1141 = vmatmul.mubr.bf16.gmra.mrb[0].mxu0 %v1087
        %v1142 = vpop.f32.mrb[0].mxu0
        %v1143 = vadd.f32 0.0, %v1142
        %v1144 = vpop.f32.mrb[0].mxu0
        %v1145 = vpop.f32.mrb[0].mxu0
        %v1146 = vadd.f32 0.0, %v1145
        %v1147 = vpop.f32.mrb[0].mxu0
        %1148 = vmatprep.mubr.bf16.mxu0 0
        %1149 = vmatmul.mubr.bf16.gmra.mrb[0].mxu0 %v1090
        %v1150 = vpop.f32.mrb[0].mxu0
        %v1151 = vadd.f32 0.0, %v1150
        %v1152 = vpop.f32.mrb[0].mxu0
        %v1153 = vpop.f32.mrb[0].mxu0
        %v1154 = vadd.f32 0.0, %v1153
        %v1155 = vpop.f32.mrb[0].mxu0
        %1156 = vdwg.mxu0
        %v1157 = vadd.f32 %v1055, %v1127
        %v1158 = vadd.f32 %v1056, %v1130
        %v1159 = vadd.f32 %v1057, %v1135
        %v1160 = vadd.f32 %v1058, %v1138
        %v1161 = vadd.f32 %v1059, %v1143
        %v1162 = vadd.f32 %v1060, %v1146
        %v1163 = vadd.f32 %v1061, %v1151
        %v1164 = vadd.f32 %v1062, %v1154
        %1165 = vst.msk [vmem:[#allocation3] sm:$0xff] %vm254, %v1157
        %1166 = vst.msk [vmem:[#allocation3 + $0x8] sm:$0xff] %vm254, %v1158
        %1167 = vst.msk [vmem:[#allocation3 + $0x10] sm:$0xff] %vm254, %v1159
        %1168 = vst.msk [vmem:[#allocation3 + $0x18] sm:$0xff] %vm254, %v1160
        %1169 = vst.msk [vmem:[#allocation3 + $0x20] sm:$0xff] %vm254, %v1161
        %1170 = vst.msk [vmem:[#allocation3 + $0x28] sm:$0xff] %vm254, %v1162
        %1171 = vst.msk [vmem:[#allocation3 + $0x30] sm:$0xff] %vm254, %v1163
        %1172 = vst.msk [vmem:[#allocation3 + $0x38] sm:$0xff] %vm254, %v1164
        %v1173 = vld [vmem:[%s1042 + $0x1] sm:$0xff]
        %v1174 = vld [vmem:[%s1042 + $0x11] sm:$0xff]
        %v1175 = vld [vmem:[%s1042 + $0x21] sm:$0xff]
        %v1176 = vld [vmem:[%s1042 + $0x31] sm:$0xff]
        %v1177 = vld [vmem:[%s1042 + $0x41] sm:$0xff]
        %v1178 = vld [vmem:[%s1042 + $0x51] sm:$0xff]
        %v1179 = vld [vmem:[%s1042 + $0x61] sm:$0xff]
        %v1180 = vld [vmem:[%s1042 + $0x71] sm:$0xff]
        %v1181 = vpack.c.bf16 %v1174, %v1173
        %v1182 = vpack.c.bf16 %v1176, %v1175
        %v1183 = vpack.c.bf16 %v1178, %v1177
        %v1184 = vpack.c.bf16 %v1180, %v1179
        %v1185 = vld [vmem:[#allocation3] sm:$0xff]
        %v1186 = vld [vmem:[#allocation3 + $0x8] sm:$0xff]
        %v1187 = vld [vmem:[#allocation3 + $0x10] sm:$0xff]
        %v1188 = vld [vmem:[#allocation3 + $0x18] sm:$0xff]
        %v1189 = vld [vmem:[#allocation3 + $0x20] sm:$0xff]
        %v1190 = vld [vmem:[#allocation3 + $0x28] sm:$0xff]
        %v1191 = vld [vmem:[#allocation3 + $0x30] sm:$0xff]
        %v1192 = vld [vmem:[#allocation3 + $0x38] sm:$0xff]
        %s1193 = scalar_lea.vmem [#allocation6], 112
        %v1194 = vld [vmem:[%s1193] sm:$0xf]
        %v1195 = vld [vmem:[%s1193 + $0x4] sm:$0xf]
        %v1196 = vld [vmem:[%s1193 + $0x8] sm:$0xf]
        %v1197 = vld [vmem:[%s1193 + $0xc] sm:$0xf]
        %v1202 = vunpack.c.l.b16 %v1194
        %v1203 = vunpack.c.l.b16 %v1195
        %v1204 = vunpack.c.l.b16 %v1196
        %v1205 = vunpack.c.l.b16 %v1197
        %v1206 = vpack.c.b16 %v1203, %v1202
        %v1207 = vpack.c.b16 %v1205, %v1204
        %v1211 = vsel %vm215, %v1181, 0
        %v1214 = vsel %vm215, %v1182, 0
        %v1217 = vsel %vm215, %v1183, 0
        %v1220 = vsel %vm215, %v1184, 0
        %1222 = vmatprep.subr.bf16.mxu0 0
        %1223 = vmatpush1.bf16.msra.mxu0 %v1206
        %1224 = vmatprep.subr.bf16.mxu0 0
        %1225 = vmatpush1.bf16.msra.mxu0 %v1207
        %1226 = vmatprep.subr.bf16.mxu0 0
        %1227 = vmatpush1.bf16.msra.mxu0 0
        %1228 = vmatprep.subr.bf16.mxu0 0
        %1229 = vmatpush1.bf16.msra.mxu0 0
        %1230 = vmatprep.subr.bf16.mxu0 0
        %1231 = vmatpush1.bf16.msra.mxu0 0
        %1232 = vmatprep.subr.bf16.mxu0 0
        %1233 = vmatpush1.bf16.msra.mxu0 0
        %1234 = vmatprep.subr.bf16.mxu0 0
        %1235 = vmatpush1.bf16.msra.mxu0 0
        %1236 = vmatprep.subr.bf16.mxu0 0
        %1237 = vmatpush1.bf16.msra.mxu0 0
        %1238 = vmatprep.subr.bf16.mxu0 0
        %1239 = vmatpush1.bf16.msra.mxu0 0
        %1240 = vmatprep.subr.bf16.mxu0 0
        %1241 = vmatpush1.bf16.msra.mxu0 0
        %1242 = vmatprep.subr.bf16.mxu0 0
        %1243 = vmatpush1.bf16.msra.mxu0 0
        %1244 = vmatprep.subr.bf16.mxu0 0
        %1245 = vmatpush1.bf16.msra.mxu0 0
        %1246 = vmatprep.subr.bf16.mxu0 0
        %1247 = vmatpush1.bf16.msra.mxu0 0
        %1248 = vmatprep.subr.bf16.mxu0 0
        %1249 = vmatpush1.bf16.msra.mxu0 0
        %1250 = vmatprep.subr.bf16.mxu0 0
        %1251 = vmatpush1.bf16.msra.mxu0 0
        %1252 = vmatprep.subr.bf16.mxu0 0
        %1253 = vmatpush1.bf16.msra.mxu0 0
        %1254 = vmatprep.mubr.bf16.mxu0 0
        %1255 = vmatmul.mubr.bf16.gmra.mrb[0].mxu0 %v1211
        %v1256 = vpop.f32.mrb[0].mxu0
        %v1257 = vadd.f32 0.0, %v1256
        %v1258 = vpop.f32.mrb[0].mxu0
        %v1259 = vpop.f32.mrb[0].mxu0
        %v1260 = vadd.f32 0.0, %v1259
        %v1261 = vpop.f32.mrb[0].mxu0
        %1262 = vmatprep.mubr.bf16.mxu0 0
        %1263 = vmatmul.mubr.bf16.gmra.mrb[0].mxu0 %v1214
        %v1264 = vpop.f32.mrb[0].mxu0
        %v1265 = vadd.f32 0.0, %v1264
        %v1266 = vpop.f32.mrb[0].mxu0
        %v1267 = vpop.f32.mrb[0].mxu0
        %v1268 = vadd.f32 0.0, %v1267
        %v1269 = vpop.f32.mrb[0].mxu0
        %1270 = vmatprep.mubr.bf16.mxu0 0
        %1271 = vmatmul.mubr.bf16.gmra.mrb[0].mxu0 %v1217
        %v1272 = vpop.f32.mrb[0].mxu0
        %v1273 = vadd.f32 0.0, %v1272
        %v1274 = vpop.f32.mrb[0].mxu0
        %v1275 = vpop.f32.mrb[0].mxu0
        %v1276 = vadd.f32 0.0, %v1275
        %v1277 = vpop.f32.mrb[0].mxu0
        %1278 = vmatprep.mubr.bf16.mxu0 0
        %1279 = vmatmul.mubr.bf16.gmra.mrb[0].mxu0 %v1220
        %v1280 = vpop.f32.mrb[0].mxu0
        %v1281 = vadd.f32 0.0, %v1280
        %v1282 = vpop.f32.mrb[0].mxu0
        %v1283 = vpop.f32.mrb[0].mxu0
        %v1284 = vadd.f32 0.0, %v1283
        %v1285 = vpop.f32.mrb[0].mxu0
        %1286 = vdwg.mxu0
        %v1287 = vadd.f32 %v1185, %v1257
        %v1288 = vadd.f32 %v1186, %v1260
        %v1289 = vadd.f32 %v1187, %v1265
        %v1290 = vadd.f32 %v1188, %v1268
        %v1291 = vadd.f32 %v1189, %v1273
        %v1292 = vadd.f32 %v1190, %v1276
        %v1293 = vadd.f32 %v1191, %v1281
        %v1294 = vadd.f32 %v1192, %v1284
        %1295 = vst.msk [vmem:[#allocation3] sm:$0xff] %vm254, %v1287
        %1296 = vst.msk [vmem:[#allocation3 + $0x8] sm:$0xff] %vm254, %v1288
        %1297 = vst.msk [vmem:[#allocation3 + $0x10] sm:$0xff] %vm254, %v1289
        %1298 = vst.msk [vmem:[#allocation3 + $0x18] sm:$0xff] %vm254, %v1290
        %1299 = vst.msk [vmem:[#allocation3 + $0x20] sm:$0xff] %vm254, %v1291
        %1300 = vst.msk [vmem:[#allocation3 + $0x28] sm:$0xff] %vm254, %v1292
        %1301 = vst.msk [vmem:[#allocation3 + $0x30] sm:$0xff] %vm254, %v1293
        %1302 = vst.msk [vmem:[#allocation3 + $0x38] sm:$0xff] %vm254, %v1294
        %v1303 = vld [vmem:[%s1042 + $0x2] sm:$0xff]
        %v1304 = vld [vmem:[%s1042 + $0x12] sm:$0xff]
        %v1305 = vld [vmem:[%s1042 + $0x22] sm:$0xff]
        %v1306 = vld [vmem:[%s1042 + $0x32] sm:$0xff]
        %v1307 = vld [vmem:[%s1042 + $0x42] sm:$0xff]
        %v1308 = vld [vmem:[%s1042 + $0x52] sm:$0xff]
        %v1309 = vld [vmem:[%s1042 + $0x62] sm:$0xff]
        %v1310 = vld [vmem:[%s1042 + $0x72] sm:$0xff]
        %v1311 = vpack.c.bf16 %v1304, %v1303
        %v1312 = vpack.c.bf16 %v1306, %v1305
        %v1313 = vpack.c.bf16 %v1308, %v1307
        %v1314 = vpack.c.bf16 %v1310, %v1309
        %v1315 = vld [vmem:[#allocation3] sm:$0xff]
        %v1316 = vld [vmem:[#allocation3 + $0x8] sm:$0xff]
        %v1317 = vld [vmem:[#allocation3 + $0x10] sm:$0xff]
        %v1318 = vld [vmem:[#allocation3 + $0x18] sm:$0xff]
        %v1319 = vld [vmem:[#allocation3 + $0x20] sm:$0xff]
        %v1320 = vld [vmem:[#allocation3 + $0x28] sm:$0xff]
        %v1321 = vld [vmem:[#allocation3 + $0x30] sm:$0xff]
        %v1322 = vld [vmem:[#allocation3 + $0x38] sm:$0xff]
        %s1323 = scalar_lea.vmem [#allocation6], 128
        %v1324 = vld [vmem:[%s1323] sm:$0xf]
        %v1325 = vld [vmem:[%s1323 + $0x4] sm:$0xf]
        %v1326 = vld [vmem:[%s1323 + $0x8] sm:$0xf]
        %v1327 = vld [vmem:[%s1323 + $0xc] sm:$0xf]
        %v1332 = vunpack.c.l.b16 %v1324
        %v1333 = vunpack.c.l.b16 %v1325
        %v1334 = vunpack.c.l.b16 %v1326
        %v1335 = vunpack.c.l.b16 %v1327
        %v1336 = vpack.c.b16 %v1333, %v1332
        %v1337 = vpack.c.b16 %v1335, %v1334
        %v1341 = vsel %vm215, %v1311, 0
        %v1344 = vsel %vm215, %v1312, 0
        %v1347 = vsel %vm215, %v1313, 0
        %v1350 = vsel %vm215, %v1314, 0
        %1352 = vmatprep.subr.bf16.mxu0 0
        %1353 = vmatpush1.bf16.msra.mxu0 %v1336
        %1354 = vmatprep.subr.bf16.mxu0 0
        %1355 = vmatpush1.bf16.msra.mxu0 %v1337
        %1356 = vmatprep.subr.bf16.mxu0 0
        %1357 = vmatpush1.bf16.msra.mxu0 0
        %1358 = vmatprep.subr.bf16.mxu0 0
        %1359 = vmatpush1.bf16.msra.mxu0 0
        %1360 = vmatprep.subr.bf16.mxu0 0
        %1361 = vmatpush1.bf16.msra.mxu0 0
        %1362 = vmatprep.subr.bf16.mxu0 0
        %1363 = vmatpush1.bf16.msra.mxu0 0
        %1364 = vmatprep.subr.bf16.mxu0 0
        %1365 = vmatpush1.bf16.msra.mxu0 0
        %1366 = vmatprep.subr.bf16.mxu0 0
        %1367 = vmatpush1.bf16.msra.mxu0 0
        %1368 = vmatprep.subr.bf16.mxu0 0
        %1369 = vmatpush1.bf16.msra.mxu0 0
        %1370 = vmatprep.subr.bf16.mxu0 0
        %1371 = vmatpush1.bf16.msra.mxu0 0
        %1372 = vmatprep.subr.bf16.mxu0 0
        %1373 = vmatpush1.bf16.msra.mxu0 0
        %1374 = vmatprep.subr.bf16.mxu0 0
        %1375 = vmatpush1.bf16.msra.mxu0 0
        %1376 = vmatprep.subr.bf16.mxu0 0
        %1377 = vmatpush1.bf16.msra.mxu0 0
        %1378 = vmatprep.subr.bf16.mxu0 0
        %1379 = vmatpush1.bf16.msra.mxu0 0
        %1380 = vmatprep.subr.bf16.mxu0 0
        %1381 = vmatpush1.bf16.msra.mxu0 0
        %1382 = vmatprep.subr.bf16.mxu0 0
        %1383 = vmatpush1.bf16.msra.mxu0 0
        %1384 = vmatprep.mubr.bf16.mxu0 0
        %1385 = vmatmul.mubr.bf16.gmra.mrb[0].mxu0 %v1341
        %v1386 = vpop.f32.mrb[0].mxu0
        %v1387 = vadd.f32 0.0, %v1386
        %v1388 = vpop.f32.mrb[0].mxu0
        %v1389 = vpop.f32.mrb[0].mxu0
        %v1390 = vadd.f32 0.0, %v1389
        %v1391 = vpop.f32.mrb[0].mxu0
        %1392 = vmatprep.mubr.bf16.mxu0 0
        %1393 = vmatmul.mubr.bf16.gmra.mrb[0].mxu0 %v1344
        %v1394 = vpop.f32.mrb[0].mxu0
        %v1395 = vadd.f32 0.0, %v1394
        %v1396 = vpop.f32.mrb[0].mxu0
        %v1397 = vpop.f32.mrb[0].mxu0
        %v1398 = vadd.f32 0.0, %v1397
        %v1399 = vpop.f32.mrb[0].mxu0
        %1400 = vmatprep.mubr.bf16.mxu0 0
        %1401 = vmatmul.mubr.bf16.gmra.mrb[0].mxu0 %v1347
        %v1402 = vpop.f32.mrb[0].mxu0
        %v1403 = vadd.f32 0.0, %v1402
        %v1404 = vpop.f32.mrb[0].mxu0
        %v1405 = vpop.f32.mrb[0].mxu0
        %v1406 = vadd.f32 0.0, %v1405
        %v1407 = vpop.f32.mrb[0].mxu0
        %1408 = vmatprep.mubr.bf16.mxu0 0
        %1409 = vmatmul.mubr.bf16.gmra.mrb[0].mxu0 %v1350
        %v1410 = vpop.f32.mrb[0].mxu0
        %v1411 = vadd.f32 0.0, %v1410
        %v1412 = vpop.f32.mrb[0].mxu0
        %v1413 = vpop.f32.mrb[0].mxu0
        %v1414 = vadd.f32 0.0, %v1413
        %v1415 = vpop.f32.mrb[0].mxu0
        %1416 = vdwg.mxu0
        %v1417 = vadd.f32 %v1315, %v1387
        %v1418 = vadd.f32 %v1316, %v1390
        %v1419 = vadd.f32 %v1317, %v1395
        %v1420 = vadd.f32 %v1318, %v1398
        %v1421 = vadd.f32 %v1319, %v1403
        %v1422 = vadd.f32 %v1320, %v1406
        %v1423 = vadd.f32 %v1321, %v1411
        %v1424 = vadd.f32 %v1322, %v1414
        %1425 = vst.msk [vmem:[#allocation3] sm:$0xff] %vm254, %v1417
        %1426 = vst.msk [vmem:[#allocation3 + $0x8] sm:$0xff] %vm254, %v1418
        %1427 = vst.msk [vmem:[#allocation3 + $0x10] sm:$0xff] %vm254, %v1419
        %1428 = vst.msk [vmem:[#allocation3 + $0x18] sm:$0xff] %vm254, %v1420
        %1429 = vst.msk [vmem:[#allocation3 + $0x20] sm:$0xff] %vm254, %v1421
        %1430 = vst.msk [vmem:[#allocation3 + $0x28] sm:$0xff] %vm254, %v1422
        %1431 = vst.msk [vmem:[#allocation3 + $0x30] sm:$0xff] %vm254, %v1423
        %1432 = vst.msk [vmem:[#allocation3 + $0x38] sm:$0xff] %vm254, %v1424
        %v1433 = vld [vmem:[#allocation3] sm:$0xff]
        %v1434 = vld [vmem:[#allocation3 + $0x8] sm:$0xff]
        %v1435 = vld [vmem:[#allocation3 + $0x10] sm:$0xff]
        %v1436 = vld [vmem:[#allocation3 + $0x18] sm:$0xff]
        %v1437 = vld [vmem:[#allocation3 + $0x20] sm:$0xff]
        %v1438 = vld [vmem:[#allocation3 + $0x28] sm:$0xff]
        %v1439 = vld [vmem:[#allocation3 + $0x30] sm:$0xff]
        %v1440 = vld [vmem:[#allocation3 + $0x38] sm:$0xff]
        %v1441 = vmax.f32 %v1433, 0.0
        %v1442 = vmax.f32 %v1434, 0.0
        %v1443 = vmax.f32 %v1435, 0.0
        %v1444 = vmax.f32 %v1436, 0.0
        %v1445 = vmax.f32 %v1437, 0.0
        %v1446 = vmax.f32 %v1438, 0.0
        %v1447 = vmax.f32 %v1439, 0.0
        %v1448 = vmax.f32 %v1440, 0.0
        %v1449 = vpack.c.bf16 %v1442, %v1441
        %v1450 = vpack.c.bf16 %v1444, %v1443
        %v1451 = vpack.c.bf16 %v1446, %v1445
        %v1452 = vpack.c.bf16 %v1448, %v1447
        %v1453 = vld [vmem:[%s2] sm:$0xf]
        %v1454 = vld [vmem:[%s2 + $0x4] sm:$0xf]
        %v1455 = vld [vmem:[%s2 + $0x8] sm:$0xf]
        %v1456 = vld [vmem:[%s2 + $0xc] sm:$0xf]
        %v1457 = vld [vmem:[%s2 + $0x10] sm:$0xf]
        %v1458 = vld [vmem:[%s2 + $0x14] sm:$0xf]
        %v1459 = vld [vmem:[%s2 + $0x18] sm:$0xf]
        %v1460 = vld [vmem:[%s2 + $0x1c] sm:$0xf]
        %v1469 = vunpack.c.l.b16 %v1453
        %v1470 = vunpack.c.l.b16 %v1454
        %v1471 = vunpack.c.l.b16 %v1455
        %v1472 = vunpack.c.l.b16 %v1456
        %v1473 = vunpack.c.l.b16 %v1457
        %v1474 = vunpack.c.l.b16 %v1458
        %v1475 = vunpack.c.l.b16 %v1459
        %v1476 = vunpack.c.l.b16 %v1460
        %v1477 = vpack.c.b16 %v1470, %v1469
        %v1478 = vpack.c.b16 %v1472, %v1471
        %v1479 = vpack.c.b16 %v1474, %v1473
        %v1480 = vpack.c.b16 %v1476, %v1475
        %v1486 = vsel %vm254, %v1449, 0
        %v1489 = vsel %vm254, %v1450, 0
        %v1492 = vsel %vm254, %v1451, 0
        %v1495 = vsel %vm254, %v1452, 0
        %1497 = vmatprep.subr.bf16.mxu0 0
        %1498 = vmatpush1.bf16.msra.mxu0 %v1477
        %1499 = vmatprep.subr.bf16.mxu0 0
        %1500 = vmatpush1.bf16.msra.mxu0 %v1478
        %1501 = vmatprep.subr.bf16.mxu0 0
        %1502 = vmatpush1.bf16.msra.mxu0 %v1479
        %1503 = vmatprep.subr.bf16.mxu0 0
        %1504 = vmatpush1.bf16.msra.mxu0 %v1480
        %1505 = vmatprep.subr.bf16.mxu0 0
        %1506 = vmatpush1.bf16.msra.mxu0 0
        %1507 = vmatprep.subr.bf16.mxu0 0
        %1508 = vmatpush1.bf16.msra.mxu0 0
        %1509 = vmatprep.subr.bf16.mxu0 0
        %1510 = vmatpush1.bf16.msra.mxu0 0
        %1511 = vmatprep.subr.bf16.mxu0 0
        %1512 = vmatpush1.bf16.msra.mxu0 0
        %1513 = vmatprep.subr.bf16.mxu0 0
        %1514 = vmatpush1.bf16.msra.mxu0 0
        %1515 = vmatprep.subr.bf16.mxu0 0
        %1516 = vmatpush1.bf16.msra.mxu0 0
        %1517 = vmatprep.subr.bf16.mxu0 0
        %1518 = vmatpush1.bf16.msra.mxu0 0
        %1519 = vmatprep.subr.bf16.mxu0 0
        %1520 = vmatpush1.bf16.msra.mxu0 0
        %1521 = vmatprep.subr.bf16.mxu0 0
        %1522 = vmatpush1.bf16.msra.mxu0 0
        %1523 = vmatprep.subr.bf16.mxu0 0
        %1524 = vmatpush1.bf16.msra.mxu0 0
        %1525 = vmatprep.subr.bf16.mxu0 0
        %1526 = vmatpush1.bf16.msra.mxu0 0
        %1527 = vmatprep.subr.bf16.mxu0 0
        %1528 = vmatpush1.bf16.msra.mxu0 0
        %1529 = vmatprep.mubr.bf16.mxu0 0
        %1530 = vmatmul.mubr.bf16.gmra.mrb[0].mxu0 %v1486
        %v1531 = vpop.f32.mrb[0].mxu0
        %v1532 = vadd.f32 0.0, %v1531
        %v1533 = vpop.f32.mrb[0].mxu0
        %v1534 = vpop.f32.mrb[0].mxu0
        %v1535 = vadd.f32 0.0, %v1534
        %v1536 = vpop.f32.mrb[0].mxu0
        %1537 = vmatprep.mubr.bf16.mxu0 0
        %1538 = vmatmul.mubr.bf16.gmra.mrb[0].mxu0 %v1489
        %v1539 = vpop.f32.mrb[0].mxu0
        %v1540 = vadd.f32 0.0, %v1539
        %v1541 = vpop.f32.mrb[0].mxu0
        %v1542 = vpop.f32.mrb[0].mxu0
        %v1543 = vadd.f32 0.0, %v1542
        %v1544 = vpop.f32.mrb[0].mxu0
        %1545 = vmatprep.mubr.bf16.mxu0 0
        %1546 = vmatmul.mubr.bf16.gmra.mrb[0].mxu0 %v1492
        %v1547 = vpop.f32.mrb[0].mxu0
        %v1548 = vadd.f32 0.0, %v1547
        %v1549 = vpop.f32.mrb[0].mxu0
        %v1550 = vpop.f32.mrb[0].mxu0
        %v1551 = vadd.f32 0.0, %v1550
        %v1552 = vpop.f32.mrb[0].mxu0
        %1553 = vmatprep.mubr.bf16.mxu0 0
        %1554 = vmatmul.mubr.bf16.gmra.mrb[0].mxu0 %v1495
        %v1555 = vpop.f32.mrb[0].mxu0
        %v1556 = vadd.f32 0.0, %v1555
        %v1557 = vpop.f32.mrb[0].mxu0
        %v1558 = vpop.f32.mrb[0].mxu0
        %v1559 = vadd.f32 0.0, %v1558
        %v1560 = vpop.f32.mrb[0].mxu0
        %1561 = vdwg.mxu0
        %v1562 = vadd.f32 %v207, %v1532
        %v1563 = vadd.f32 %v208, %v1535
        %v1564 = vadd.f32 %v209, %v1540
        %v1565 = vadd.f32 %v210, %v1543
        %v1566 = vadd.f32 %v211, %v1548
        %v1567 = vadd.f32 %v212, %v1551
        %v1568 = vadd.f32 %v213, %v1556
        %v1569 = vadd.f32 %v214, %v1559
        %1570 = vst.msk [vmem:[%s205] sm:$0xff] %vm215, %v1562
        %1571 = vst.msk [vmem:[%s205 + $0x8] sm:$0xff] %vm215, %v1563
        %1572 = vst.msk [vmem:[%s205 + $0x10] sm:$0xff] %vm215, %v1564
        %1573 = vst.msk [vmem:[%s205 + $0x18] sm:$0xff] %vm215, %v1565
        %1574 = vst.msk [vmem:[%s205 + $0x20] sm:$0xff] %vm215, %v1566
        %1575 = vst.msk [vmem:[%s205 + $0x28] sm:$0xff] %vm215, %v1567
        %1576 = vst.msk [vmem:[%s205 + $0x30] sm:$0xff] %vm215, %v1568
        %1577 = vst.msk [vmem:[%s205 + $0x38] sm:$0xff] %vm215, %v1569
        %p1578 = scmp.lt.s32.totalorder %s18, 1
        %s1579 = scalar_select %p1578, %s18, 1
        %s1580 = smul.addr %s1579, 8
        %s1581 = smul.addr %s1580, 8
        %s1582 = scalar_lea.vmem %s3, %s1581
        // Predicated region
        $region41: #{tpu_custom_call.1} parent=31 // pred_check
          %p1583 = pneg %p104
        $region42: #{tpu_custom_call.1} parent=31 // pred_check_branch
          %1585 = sbr.rel (%p1583) target = $region44
        $region43: #{tpu_custom_call.1} parent=31 // pred_region
          _
        $region44: #{tpu_custom_call.1} parent=31 // pred_fallthru
          _
      $region32: #{tpu_custom_call.1} parent=5 // pred_fallthru
        _
      %p1586 = scmp.le.s32.totalorder 2, %s13
      // Predicated region
      $region45: #{tpu_custom_call.1} parent=5 // pred_check
        %p1587 = pneg %p1586
      $region46: #{tpu_custom_call.1} parent=5 // pred_check_branch
        %1589 = sbr.rel (%p1587) target = $region48
      $region47: #{tpu_custom_call.1} parent=5 // pred_region
        %s1590 = ssub.s32 %s13, 2
        // Predicated region
        $region49: #{tpu_custom_call.1} parent=47 // pred_check
          %p1591 = pneg %p110
        $region50: #{tpu_custom_call.1} parent=47 // pred_check_branch
          %1593 = sbr.rel (%p1591) target = $region52
        $region51: #{tpu_custom_call.1} parent=47 // pred_region
          %p1594 = scmp.lt.s32.totalorder %s19, 1
          %s1595 = scalar_select %p1594, %s19, 1
          %s1596 = smul.addr %s1595, 8
          %s1597 = smul.addr %s1596, 8
          %s1598 = scalar_lea.vmem %s3, %s1597
        $region52: #{tpu_custom_call.1} parent=47 // pred_fallthru
          _
      $region48: #{tpu_custom_call.1} parent=5 // pred_fallthru
        _
    $region6: #{tpu_custom_call.1} parent=1 // loop_footer
      %s17 = sadd.s32 1, %s13
    $region7: #{tpu_custom_call.1} parent=1 // loop_footer_branch
      %12 = sbr.rel target = $region3
    $region8: #{tpu_custom_call.1} parent=1 // loop_exit
      _
    %1599 = vsyncpa [#allocation5], 1
    %s1600 = scalar_lea.sflag [#allocation5], 1
    %1601 = vsyncpa %s1600, 1
    %1602 = vsyncpa [#allocation7], 1

</llo_original>
